<compile_context>
chip_gen: v5e
topology: v5e:2x2
jax: 0.10.0
libtpu: 0.0.40
codegen_flags: <defaults>
</compile_context>

<pallas_src>
import jax
import jax.numpy as jnp
import numpy as np
from jax.experimental import pallas as pl
from jax.experimental.pallas import tpu as pltpu  # noqa: F401  (TPU backend assumed)

N_NODES = 16
IN_CH = 4
IN_PAD = 8                       # first-layer input zero-padded to a sublane multiple
HIDDEN = 32
EDGE_DIM = 8
BATCH = 2
NEG_SLOPE = 0.2                  # GATv2Conv default negative_slope
BN = BATCH * N_NODES             # 32 node rows across the whole batch

# ---- packed parameter-slab row layout (all offsets multiples of 8) ----
_W1_LO, _W1_HI = 0, IN_PAD                      # [ 8, 2H] lin_l|lin_r layer 1 (rows 4:8 zero-pad)
_W2_LO, _W2_HI = _W1_HI, _W1_HI + HIDDEN        # [32, 2H] lin_l|lin_r layer 2
_WE_LO, _WE_HI = _W2_HI, _W2_HI + EDGE_DIM      # [ 8, 2H] lin_edge layer1|layer2
_BV_LO = _WE_HI                                 # [ 8, 2H] biases / att vectors
P_ROWS = _BV_LO + 8                             # 56

# ---- packed activation-slab row layout (one DMA for x + adjacency) ----
_X_LO = 0                                       # rows  0:32  x      (cols 0:IN_CH used)
_ADJ_LO = BN                                    # rows 32:64  adj    (cols 0:N   used)
ACT_ROWS = 2 * BN                               # 64
ACT_COLS = N_NODES                              # 16 (>= IN_PAD)

# ---- advisory cost estimate (lets XLA overlap this tiny call with neighbors) ----
_FLOPS = (2 * BATCH * N_NODES * N_NODES * EDGE_DIM * 2 * HIDDEN      # fused edge projection
          + 2 * BN * IN_PAD * 2 * HIDDEN                             # layer-1 node projection
          + 2 * BN * HIDDEN * 2 * HIDDEN                             # layer-2 node projection
          + 2 * 4 * BATCH * N_NODES * N_NODES * HIDDEN)              # messages / att / aggregate
_TRANS = 2 * BATCH * N_NODES * N_NODES + BN * HIDDEN                 # softmax exps + SiLU sigmoid
_BYTES = 4 * (ACT_ROWS * ACT_COLS + BATCH * N_NODES * N_NODES * EDGE_DIM
              + P_ROWS * 2 * HIDDEN + BN * HIDDEN)


def _gatv2_attention(xl_b, xr_b, ea3_b, mask_b, att_row, bias_row):
    """Attention/softmax/aggregation of one GATv2Conv (heads=1) on one dense graph.

    xl_b, xr_b: [N, H]    lin_l / lin_r projected node features of this graph
    ea3_b:      [N, N, H] projected edge attrs (dst, src, feat)
    mask_b:     [N, N]    adjacency mask (dst, src), self loops included
    att_row:    [1, H]    attention vector
    bias_row:   [1, H]    output bias
    """
    m = xr_b[:, None, :] + xl_b[None, :, :] + ea3_b              # x_i + x_j + e_ij
    m = jnp.maximum(m, NEG_SLOPE * m)                            # leaky_relu (slope < 1)
    logits = jnp.sum(m * att_row[None, :, :], axis=-1)           # (. * att).sum(-1)
    logits = jnp.where(mask_b, logits, jnp.float32(-1e30))       # mask non-edges
    p = jnp.exp(logits - jnp.max(logits, axis=-1, keepdims=True))
    p = jnp.where(mask_b, p, 0.0)
    denom = jnp.sum(p, axis=-1, keepdims=True) + 1e-16
    alpha = p * pl.reciprocal(denom, approx=False)               # segment softmax
    # NOTE: every row has a self loop; an all-masked row would give alpha = 0 (not NaN).
    return jnp.dot(alpha, xl_b, preferred_element_type=jnp.float32) + bias_row


def _encoder_kernel(act_ref, ea_ref, p_ref, out_ref):
    act = act_ref[...]                                           # [64, 16]  x | adj slab
    p = p_ref[...]                                               # [56, 2H]  param slab

    w1 = p[_W1_LO:_W1_HI, :]                                     # [ 8, 2H]
    w2 = p[_W2_LO:_W2_HI, :]                                     # [32, 2H]
    we = p[_WE_LO:_WE_HI, :]                                     # [ 8, 2H]
    bvec1 = p[_BV_LO + 0:_BV_LO + 1, :]
    bvec2 = p[_BV_LO + 1:_BV_LO + 2, :]
    att1, att2 = p[_BV_LO + 2:_BV_LO + 3, :HIDDEN], p[_BV_LO + 2:_BV_LO + 3, HIDDEN:]
    bias1, bias2 = p[_BV_LO + 3:_BV_LO + 4, :HIDDEN], p[_BV_LO + 3:_BV_LO + 4, HIDDEN:]

    x = act[_X_LO:_X_LO + BN, 0:IN_PAD]                          # [32, 8] (cols 4:8 zero)
    masks = [act[_ADJ_LO + b * N_NODES:_ADJ_LO + (b + 1) * N_NODES, :] > 0.0
             for b in range(BATCH)]                              # hoisted, reused by both layers

    # lin_edge fused across both layers and all graphs: one MXU push.
    ea_proj = jnp.dot(ea_ref[...], we, preferred_element_type=jnp.float32)   # [B*N*N, 2H]

    # ---------------- layer 1 ----------------
    xx = jnp.dot(x, w1, preferred_element_type=jnp.float32) + bvec1          # [B*N, 2H]
    xl, xr = xx[:, :HIDDEN], xx[:, HIDDEN:]
    hs = []
    for b in range(BATCH):                                       # static 2-way unroll
        r0 = b * N_NODES
        e0 = b * N_NODES * N_NODES
        ea1_b = ea_proj[e0:e0 + N_NODES * N_NODES, :HIDDEN].reshape(N_NODES, N_NODES, HIDDEN)
        hs.append(_gatv2_attention(xl[r0:r0 + N_NODES, :], xr[r0:r0 + N_NODES, :],
                                   ea1_b, masks[b], att1, bias1))
    h = jnp.concatenate(hs, axis=0)                              # [B*N, H]
    h = h * jax.nn.sigmoid(h)                                    # SiLU between layers

    # ---------------- layer 2 ----------------
    xx = jnp.dot(h, w2, preferred_element_type=jnp.float32) + bvec2          # [B*N, 2H]
    xl, xr = xx[:, :HIDDEN], xx[:, HIDDEN:]
    outs = []
    for b in range(BATCH):
        r0 = b * N_NODES
        e0 = b * N_NODES * N_NODES
        # layer-2 edge slice deferred until here (only one [N,N,H] temp live at a time)
        ea2_b = ea_proj[e0:e0 + N_NODES * N_NODES, HIDDEN:].reshape(N_NODES, N_NODES, HIDDEN)
        outs.append(_gatv2_attention(xl[r0:r0 + N_NODES, :], xr[r0:r0 + N_NODES, :],
                                     ea2_b, masks[b], att2, bias2))
    out_ref[...] = jnp.concatenate(outs, axis=0)                 # [B*N, H]


def spatial_graph_encoder(act_slab, ea_flat, param_slab):
    """act_slab: [2*B*N, N], ea_flat: [B*N*N, E], param_slab: [56, 2H]."""
    out = pl.pallas_call(
        _encoder_kernel,
        out_shape=jax.ShapeDtypeStruct((BN, HIDDEN), jnp.float32),
        cost_estimate=pl.CostEstimate(
            flops=_FLOPS, transcendentals=_TRANS, bytes_accessed=_BYTES),
    )(act_slab, ea_flat, param_slab)
    return out.reshape(BATCH, N_NODES, HIDDEN)                   # major-dim split: free


# ----------------------- plain-JAX glue (graph prep, params, reference) -----------------------

def build_dense_graph(edge_index, edge_attr, num_nodes):
    """Densify edge list; add GATv2's default self loops with fill_value='mean'."""
    # TODO(synk): dense formulation assumes no duplicate (src, dst) edges; PyG would
    # softmax over duplicates separately.
    src, dst = edge_index[0], edge_index[1]
    e = edge_attr.shape[1]
    sums = jnp.zeros((num_nodes, e), jnp.float32).at[dst].add(edge_attr)
    counts = jnp.zeros((num_nodes,), jnp.float32).at[dst].add(1.0)
    loop_attr = sums / jnp.maximum(counts, 1.0)[:, None]
    diag = jnp.arange(num_nodes)
    adj = jnp.zeros((num_nodes, num_nodes), jnp.float32).at[dst, src].set(1.0)
    adj = adj.at[diag, diag].set(1.0)
    ea = jnp.zeros((num_nodes, num_nodes, e), jnp.float32).at[dst, src].set(edge_attr)
    ea = ea.at[diag, diag, :].set(loop_attr)
    return adj, ea.reshape(num_nodes * num_nodes, e)


def _glorot(key, shape):
    lim = float(np.sqrt(6.0 / (shape[0] + shape[1])))
    return jax.random.uniform(key, shape, jnp.float32, -lim, lim)


def init_layer_params(key, in_dim, hid, edge_dim):
    ks = jax.random.split(key, 7)
    wl = _glorot(ks[0], (in_dim, hid))                       # lin_l weight
    bl = 0.05 * jax.random.normal(ks[1], (1, hid), jnp.float32)
    wr = _glorot(ks[2], (in_dim, hid))                       # lin_r weight
    br = 0.05 * jax.random.normal(ks[3], (1, hid), jnp.float32)
    we = _glorot(ks[4], (edge_dim, hid))                     # lin_edge weight (no bias)
    att = _glorot(ks[5], (1, hid))                           # attention vector (heads=1)
    bias = 0.05 * jax.random.normal(ks[6], (1, hid), jnp.float32)
    return (wl, bl, wr, br, we, att, bias)


def pack_params(params):
    """Pack 14 tiny parameter tensors into one [56, 2H] slab."""
    (wl1, bl1, wr1, br1, we1, att1, b1,
     wl2, bl2, wr2, br2, we2, att2, b2) = params
    w1 = jnp.pad(jnp.concatenate([wl1, wr1], axis=1),
                 ((0, IN_PAD - IN_CH), (0, 0)))              # [ 8, 64] (zero-pad rows)
    w2 = jnp.concatenate([wl2, wr2], axis=1)                 # [32, 64]
    we = jnp.concatenate([we1, we2], axis=1)                 # [ 8, 64]
    bv = jnp.zeros((8, 2 * HIDDEN), jnp.float32)
    bv = bv.at[0, :].set(jnp.concatenate([bl1.reshape(-1), br1.reshape(-1)]))
    bv = bv.at[1, :].set(jnp.concatenate([bl2.reshape(-1), br2.reshape(-1)]))
    bv = bv.at[2, :HIDDEN].set(att1.reshape(-1))
    bv = bv.at[2, HIDDEN:].set(att2.reshape(-1))
    bv = bv.at[3, :HIDDEN].set(b1.reshape(-1))
    bv = bv.at[3, HIDDEN:].set(b2.reshape(-1))
    return jnp.concatenate([w1, w2, we, bv], axis=0)         # [56, 64]


def pack_activations(x_b, adj_b):
    """x_b: [B, N, IN_CH], adj_b: [B, N, N] -> one [2*B*N, N] slab (x rows | adj rows)."""
    act = jnp.zeros((ACT_ROWS, ACT_COLS), jnp.float32)
    act = act.at[_X_LO:_X_LO + BN, :IN_CH].set(x_b.reshape(BN, IN_CH))
    act = act.at[_ADJ_LO:_ADJ_LO + BN, :].set(adj_b.reshape(BN, N_NODES))
    return act


def _gatv2_ref(x, adj, ea_flat, wl, bl, wr, br, we, att, bias):
    """Unfused, unpacked reference mirroring PyG GATv2Conv (heads=1) math."""
    n = adj.shape[0]
    xl = x @ wl + bl
    xr = x @ wr + br
    ea = (ea_flat @ we).reshape(n, n, -1)
    m = xr[:, None, :] + xl[None, :, :] + ea
    m = jnp.where(m > 0, m, NEG_SLOPE * m)
    logits = jnp.sum(m * att[None, :, :], axis=-1)
    logits = jnp.where(adj > 0, logits, jnp.float32(-1e30))
    p = jnp.exp(logits - jnp.max(logits, axis=-1, keepdims=True))
    p = jnp.where(adj > 0, p, 0.0)
    alpha = p / (jnp.sum(p, axis=-1, keepdims=True) + 1e-16)
    return alpha @ xl + bias


def encoder_ref(x, adj, ea_flat, params):
    h = _gatv2_ref(x, adj, ea_flat, *params[:7])
    h = h * jax.nn.sigmoid(h)
    return _gatv2_ref(h, adj, ea_flat, *params[7:])


if __name__ == "__main__":
    key = jax.random.PRNGKey(0)
    k_x, k_ea, k_p1, k_p2 = jax.random.split(key, 4)

    x_b = jax.random.normal(k_x, (BATCH, N_NODES, IN_CH), jnp.float32)

    # deterministic edge list: each node -> (i+1)%N and (i+5)%N (no self loops, no dups)
    src = np.concatenate([np.arange(N_NODES), np.arange(N_NODES)])
    dst = np.concatenate([(np.arange(N_NODES) + 1) % N_NODES,
                          (np.arange(N_NODES) + 5) % N_NODES])
    edge_index = jnp.asarray(np.stack([src, dst]), dtype=jnp.int32)          # [2, 32]
    edge_attr_b = jax.random.normal(k_ea, (BATCH, edge_index.shape[1], EDGE_DIM),
                                    jnp.float32)

    adjs, eas = [], []
    for g in range(BATCH):
        a, e = build_dense_graph(edge_index, edge_attr_b[g], N_NODES)
        adjs.append(a)
        eas.append(e)
    adj_b = jnp.stack(adjs)                                  # [B, 16, 16]
    ea_b = jnp.stack(eas)                                    # [B, 256, 8]

    params = (init_layer_params(k_p1, IN_CH, HIDDEN, EDGE_DIM)
              + init_layer_params(k_p2, HIDDEN, HIDDEN, EDGE_DIM))
    param_slab = pack_params(params)                         # [56, 64]
    act_slab = pack_activations(x_b, adj_b)                  # [64, 16]
    ea_flat = ea_b.reshape(BATCH * N_NODES * N_NODES, EDGE_DIM)   # [512, 8]

    out = spatial_graph_encoder(act_slab, ea_flat, param_slab)
    out = jax.block_until_ready(out)

    ref = jnp.stack([encoder_ref(x_b[g], adj_b[g], ea_b[g], params)
                     for g in range(BATCH)])
    assert out.shape == (BATCH, N_NODES, HIDDEN)
    np.testing.assert_allclose(np.asarray(out), np.asarray(ref), rtol=1e-4, atol=1e-4)
    print("KERNEL_OK")
</pallas_src>

<mosaic_0001>
module attributes {stable_mosaic.version = 11 : i64} {
  func.func @_encoder_kernel(%arg0: memref<64x16xf32, #tpu.memory_space<vmem>>, %arg1: memref<512x8xf32, #tpu.memory_space<vmem>>, %arg2: memref<56x64xf32, #tpu.memory_space<vmem>>, %arg3: memref<32x32xf32, #tpu.memory_space<vmem>>) attributes {dimension_semantics = [], scalar_prefetch = 0 : i64, scratch_operands = 0 : i64, tpu.core_type = #tpu.core_type<tc>} {
    %c0 = arith.constant 0 : index
    %c0_0 = arith.constant 0 : index
    %0 = vector.load %arg0[%c0, %c0_0] : memref<64x16xf32, #tpu.memory_space<vmem>>, vector<64x16xf32>
    %c0_1 = arith.constant 0 : index
    %c0_2 = arith.constant 0 : index
    %1 = vector.load %arg2[%c0_1, %c0_2] : memref<56x64xf32, #tpu.memory_space<vmem>>, vector<56x64xf32>
    %2 = vector.extract_strided_slice %1 {offsets = [0, 0], sizes = [8, 64], strides = [1, 1]} : vector<56x64xf32> to vector<8x64xf32>
    %3 = vector.extract_strided_slice %1 {offsets = [8, 0], sizes = [32, 64], strides = [1, 1]} : vector<56x64xf32> to vector<32x64xf32>
    %4 = vector.extract_strided_slice %1 {offsets = [40, 0], sizes = [8, 64], strides = [1, 1]} : vector<56x64xf32> to vector<8x64xf32>
    %5 = vector.extract_strided_slice %1 {offsets = [48, 0], sizes = [1, 64], strides = [1, 1]} : vector<56x64xf32> to vector<1x64xf32>
    %6 = vector.extract_strided_slice %1 {offsets = [49, 0], sizes = [1, 64], strides = [1, 1]} : vector<56x64xf32> to vector<1x64xf32>
    %7 = vector.extract_strided_slice %1 {offsets = [50, 0], sizes = [1, 32], strides = [1, 1]} : vector<56x64xf32> to vector<1x32xf32>
    %8 = vector.extract_strided_slice %1 {offsets = [50, 32], sizes = [1, 32], strides = [1, 1]} : vector<56x64xf32> to vector<1x32xf32>
    %9 = vector.extract_strided_slice %1 {offsets = [51, 0], sizes = [1, 32], strides = [1, 1]} : vector<56x64xf32> to vector<1x32xf32>
    %10 = vector.extract_strided_slice %1 {offsets = [51, 32], sizes = [1, 32], strides = [1, 1]} : vector<56x64xf32> to vector<1x32xf32>
    %11 = vector.extract_strided_slice %0 {offsets = [0, 0], sizes = [32, 8], strides = [1, 1]} : vector<64x16xf32> to vector<32x8xf32>
    %12 = vector.extract_strided_slice %0 {offsets = [32, 0], sizes = [16, 16], strides = [1, 1]} : vector<64x16xf32> to vector<16x16xf32>
    %cst = arith.constant 0.000000e+00 : f32
    %13 = vector.broadcast %cst : f32 to vector<16x16xf32>
    %14 = arith.cmpf ogt, %12, %13 : vector<16x16xf32>
    %15 = vector.extract_strided_slice %0 {offsets = [48, 0], sizes = [16, 16], strides = [1, 1]} : vector<64x16xf32> to vector<16x16xf32>
    %cst_3 = arith.constant 0.000000e+00 : f32
    %16 = vector.broadcast %cst_3 : f32 to vector<16x16xf32>
    %17 = arith.cmpf ogt, %15, %16 : vector<16x16xf32>
    %c0_4 = arith.constant 0 : index
    %c0_5 = arith.constant 0 : index
    %18 = vector.load %arg1[%c0_4, %c0_5] : memref<512x8xf32, #tpu.memory_space<vmem>>, vector<512x8xf32>
    %cst_6 = arith.constant dense<0.000000e+00> : vector<512x64xf32>
    %19 = tpu.matmul %18, %4, %cst_6 {dimension_numbers = #tpu.dot_dimension_numbers<[1], [0], [0], [1], [0, 0, 1, 1], [], []>} : vector<512x8xf32>, vector<8x64xf32>, vector<512x64xf32> -> vector<512x64xf32>
    %cst_7 = arith.constant dense<0.000000e+00> : vector<32x64xf32>
    %20 = tpu.matmul %11, %2, %cst_7 {dimension_numbers = #tpu.dot_dimension_numbers<[1], [0], [0], [1], [0, 0, 1, 1], [], []>} : vector<32x8xf32>, vector<8x64xf32>, vector<32x64xf32> -> vector<32x64xf32>
    %21 = vector.broadcast %5 : vector<1x64xf32> to vector<32x64xf32>
    %22 = arith.addf %20, %21 : vector<32x64xf32>
    %23 = vector.extract_strided_slice %22 {offsets = [0, 0], sizes = [32, 32], strides = [1, 1]} : vector<32x64xf32> to vector<32x32xf32>
    %24 = vector.extract_strided_slice %22 {offsets = [0, 32], sizes = [32, 32], strides = [1, 1]} : vector<32x64xf32> to vector<32x32xf32>
    %25 = vector.extract_strided_slice %19 {offsets = [0, 0], sizes = [256, 32], strides = [1, 1]} : vector<512x64xf32> to vector<256x32xf32>
    %26 = vector.shape_cast %25 : vector<256x32xf32> to vector<16x16x32xf32>
    %27 = vector.extract_strided_slice %23 {offsets = [0, 0], sizes = [16, 32], strides = [1, 1]} : vector<32x32xf32> to vector<16x32xf32>
    %28 = vector.extract_strided_slice %24 {offsets = [0, 0], sizes = [16, 32], strides = [1, 1]} : vector<32x32xf32> to vector<16x32xf32>
    %29 = vector.shape_cast %28 : vector<16x32xf32> to vector<16x1x32xf32>
    %30 = vector.shape_cast %27 : vector<16x32xf32> to vector<1x16x32xf32>
    %31 = vector.broadcast %29 : vector<16x1x32xf32> to vector<16x16x32xf32>
    %32 = vector.broadcast %30 : vector<1x16x32xf32> to vector<16x16x32xf32>
    %33 = arith.addf %31, %32 : vector<16x16x32xf32>
    %34 = arith.addf %33, %26 : vector<16x16x32xf32>
    %cst_8 = arith.constant 2.000000e-01 : f32
    %35 = vector.broadcast %cst_8 : f32 to vector<16x16x32xf32>
    %36 = arith.mulf %35, %34 : vector<16x16x32xf32>
    %37 = arith.maximumf %34, %36 : vector<16x16x32xf32>
    %38 = vector.shape_cast %7 : vector<1x32xf32> to vector<1x1x32xf32>
    %39 = vector.broadcast %38 : vector<1x1x32xf32> to vector<16x16x32xf32>
    %40 = arith.mulf %37, %39 : vector<16x16x32xf32>
    %cst_9 = arith.constant dense<0.000000e+00> : vector<16x16xf32>
    %41 = vector.multi_reduction <add>, %40, %cst_9 [2] : vector<16x16x32xf32> to vector<16x16xf32>
    %cst_10 = arith.constant -1.000000e+30 : f32
    %42 = vector.broadcast %cst_10 : f32 to vector<16x16xf32>
    %43 = arith.select %14, %41, %42 : vector<16x16xi1>, vector<16x16xf32>
    %cst_11 = arith.constant dense<0xFF800000> : vector<16xf32>
    %44 = vector.multi_reduction <maximumf>, %43, %cst_11 [1] : vector<16x16xf32> to vector<16xf32>
    %45 = vector.shape_cast %44 : vector<16xf32> to vector<16x1xf32>
    %46 = vector.broadcast %45 : vector<16x1xf32> to vector<16x16xf32>
    %47 = arith.subf %43, %46 : vector<16x16xf32>
    %48 = math.exp %47 : vector<16x16xf32>
    %cst_12 = arith.constant 0.000000e+00 : f32
    %49 = vector.broadcast %cst_12 : f32 to vector<16x16xf32>
    %50 = arith.select %14, %48, %49 : vector<16x16xi1>, vector<16x16xf32>
    %cst_13 = arith.constant dense<0.000000e+00> : vector<16xf32>
    %51 = vector.multi_reduction <add>, %50, %cst_13 [1] : vector<16x16xf32> to vector<16xf32>
    %52 = vector.shape_cast %51 : vector<16xf32> to vector<16x1xf32>
    %cst_14 = arith.constant 1.000000e-16 : f32
    %53 = vector.broadcast %cst_14 : f32 to vector<16x1xf32>
    %54 = arith.addf %52, %53 : vector<16x1xf32>
    %55 = tpu.reciprocal %54 : vector<16x1xf32> -> vector<16x1xf32>
    %56 = vector.broadcast %55 : vector<16x1xf32> to vector<16x16xf32>
    %57 = arith.mulf %50, %56 : vector<16x16xf32>
    %cst_15 = arith.constant dense<0.000000e+00> : vector<16x32xf32>
    %58 = tpu.matmul %57, %27, %cst_15 {dimension_numbers = #tpu.dot_dimension_numbers<[1], [0], [0], [1], [0, 0, 1, 1], [], []>} : vector<16x16xf32>, vector<16x32xf32>, vector<16x32xf32> -> vector<16x32xf32>
    %59 = vector.broadcast %9 : vector<1x32xf32> to vector<16x32xf32>
    %60 = arith.addf %58, %59 : vector<16x32xf32>
    %61 = vector.extract_strided_slice %19 {offsets = [256, 0], sizes = [256, 32], strides = [1, 1]} : vector<512x64xf32> to vector<256x32xf32>
    %62 = vector.shape_cast %61 : vector<256x32xf32> to vector<16x16x32xf32>
    %63 = vector.extract_strided_slice %23 {offsets = [16, 0], sizes = [16, 32], strides = [1, 1]} : vector<32x32xf32> to vector<16x32xf32>
    %64 = vector.extract_strided_slice %24 {offsets = [16, 0], sizes = [16, 32], strides = [1, 1]} : vector<32x32xf32> to vector<16x32xf32>
    %65 = vector.shape_cast %64 : vector<16x32xf32> to vector<16x1x32xf32>
    %66 = vector.shape_cast %63 : vector<16x32xf32> to vector<1x16x32xf32>
    %67 = vector.broadcast %65 : vector<16x1x32xf32> to vector<16x16x32xf32>
    %68 = vector.broadcast %66 : vector<1x16x32xf32> to vector<16x16x32xf32>
    %69 = arith.addf %67, %68 : vector<16x16x32xf32>
    %70 = arith.addf %69, %62 : vector<16x16x32xf32>
    %cst_16 = arith.constant 2.000000e-01 : f32
    %71 = vector.broadcast %cst_16 : f32 to vector<16x16x32xf32>
    %72 = arith.mulf %71, %70 : vector<16x16x32xf32>
    %73 = arith.maximumf %70, %72 : vector<16x16x32xf32>
    %74 = vector.shape_cast %7 : vector<1x32xf32> to vector<1x1x32xf32>
    %75 = vector.broadcast %74 : vector<1x1x32xf32> to vector<16x16x32xf32>
    %76 = arith.mulf %73, %75 : vector<16x16x32xf32>
    %cst_17 = arith.constant dense<0.000000e+00> : vector<16x16xf32>
    %77 = vector.multi_reduction <add>, %76, %cst_17 [2] : vector<16x16x32xf32> to vector<16x16xf32>
    %cst_18 = arith.constant -1.000000e+30 : f32
    %78 = vector.broadcast %cst_18 : f32 to vector<16x16xf32>
    %79 = arith.select %17, %77, %78 : vector<16x16xi1>, vector<16x16xf32>
    %cst_19 = arith.constant dense<0xFF800000> : vector<16xf32>
    %80 = vector.multi_reduction <maximumf>, %79, %cst_19 [1] : vector<16x16xf32> to vector<16xf32>
    %81 = vector.shape_cast %80 : vector<16xf32> to vector<16x1xf32>
    %82 = vector.broadcast %81 : vector<16x1xf32> to vector<16x16xf32>
    %83 = arith.subf %79, %82 : vector<16x16xf32>
    %84 = math.exp %83 : vector<16x16xf32>
    %cst_20 = arith.constant 0.000000e+00 : f32
    %85 = vector.broadcast %cst_20 : f32 to vector<16x16xf32>
    %86 = arith.select %17, %84, %85 : vector<16x16xi1>, vector<16x16xf32>
    %cst_21 = arith.constant dense<0.000000e+00> : vector<16xf32>
    %87 = vector.multi_reduction <add>, %86, %cst_21 [1] : vector<16x16xf32> to vector<16xf32>
    %88 = vector.shape_cast %87 : vector<16xf32> to vector<16x1xf32>
    %cst_22 = arith.constant 1.000000e-16 : f32
    %89 = vector.broadcast %cst_22 : f32 to vector<16x1xf32>
    %90 = arith.addf %88, %89 : vector<16x1xf32>
    %91 = tpu.reciprocal %90 : vector<16x1xf32> -> vector<16x1xf32>
    %92 = vector.broadcast %91 : vector<16x1xf32> to vector<16x16xf32>
    %93 = arith.mulf %86, %92 : vector<16x16xf32>
    %cst_23 = arith.constant dense<0.000000e+00> : vector<16x32xf32>
    %94 = tpu.matmul %93, %63, %cst_23 {dimension_numbers = #tpu.dot_dimension_numbers<[1], [0], [0], [1], [0, 0, 1, 1], [], []>} : vector<16x16xf32>, vector<16x32xf32>, vector<16x32xf32> -> vector<16x32xf32>
    %95 = vector.broadcast %9 : vector<1x32xf32> to vector<16x32xf32>
    %96 = arith.addf %94, %95 : vector<16x32xf32>
    %97 = tpu.concatenate %60, %96 in 0 : vector<16x32xf32>, vector<16x32xf32> -> vector<32x32xf32>
    %98 = arith.negf %97 : vector<32x32xf32>
    %99 = math.exp %98 : vector<32x32xf32>
    %cst_24 = arith.constant 1.000000e+00 : f32
    %100 = vector.broadcast %cst_24 : f32 to vector<32x32xf32>
    %101 = arith.addf %100, %99 : vector<32x32xf32>
    %102 = arith.divf %100, %101 : vector<32x32xf32>
    %103 = arith.mulf %97, %102 : vector<32x32xf32>
    %cst_25 = arith.constant dense<0.000000e+00> : vector<32x64xf32>
    %104 = tpu.matmul %103, %3, %cst_25 {dimension_numbers = #tpu.dot_dimension_numbers<[1], [0], [0], [1], [0, 0, 1, 1], [], []>} : vector<32x32xf32>, vector<32x64xf32>, vector<32x64xf32> -> vector<32x64xf32>
    %105 = vector.broadcast %6 : vector<1x64xf32> to vector<32x64xf32>
    %106 = arith.addf %104, %105 : vector<32x64xf32>
    %107 = vector.extract_strided_slice %106 {offsets = [0, 0], sizes = [32, 32], strides = [1, 1]} : vector<32x64xf32> to vector<32x32xf32>
    %108 = vector.extract_strided_slice %106 {offsets = [0, 32], sizes = [32, 32], strides = [1, 1]} : vector<32x64xf32> to vector<32x32xf32>
    %109 = vector.extract_strided_slice %19 {offsets = [0, 32], sizes = [256, 32], strides = [1, 1]} : vector<512x64xf32> to vector<256x32xf32>
    %110 = vector.shape_cast %109 : vector<256x32xf32> to vector<16x16x32xf32>
    %111 = vector.extract_strided_slice %107 {offsets = [0, 0], sizes = [16, 32], strides = [1, 1]} : vector<32x32xf32> to vector<16x32xf32>
    %112 = vector.extract_strided_slice %108 {offsets = [0, 0], sizes = [16, 32], strides = [1, 1]} : vector<32x32xf32> to vector<16x32xf32>
    %113 = vector.shape_cast %112 : vector<16x32xf32> to vector<16x1x32xf32>
    %114 = vector.shape_cast %111 : vector<16x32xf32> to vector<1x16x32xf32>
    %115 = vector.broadcast %113 : vector<16x1x32xf32> to vector<16x16x32xf32>
    %116 = vector.broadcast %114 : vector<1x16x32xf32> to vector<16x16x32xf32>
    %117 = arith.addf %115, %116 : vector<16x16x32xf32>
    %118 = arith.addf %117, %110 : vector<16x16x32xf32>
    %cst_26 = arith.constant 2.000000e-01 : f32
    %119 = vector.broadcast %cst_26 : f32 to vector<16x16x32xf32>
    %120 = arith.mulf %119, %118 : vector<16x16x32xf32>
    %121 = arith.maximumf %118, %120 : vector<16x16x32xf32>
    %122 = vector.shape_cast %8 : vector<1x32xf32> to vector<1x1x32xf32>
    %123 = vector.broadcast %122 : vector<1x1x32xf32> to vector<16x16x32xf32>
    %124 = arith.mulf %121, %123 : vector<16x16x32xf32>
    %cst_27 = arith.constant dense<0.000000e+00> : vector<16x16xf32>
    %125 = vector.multi_reduction <add>, %124, %cst_27 [2] : vector<16x16x32xf32> to vector<16x16xf32>
    %cst_28 = arith.constant -1.000000e+30 : f32
    %126 = vector.broadcast %cst_28 : f32 to vector<16x16xf32>
    %127 = arith.select %14, %125, %126 : vector<16x16xi1>, vector<16x16xf32>
    %cst_29 = arith.constant dense<0xFF800000> : vector<16xf32>
    %128 = vector.multi_reduction <maximumf>, %127, %cst_29 [1] : vector<16x16xf32> to vector<16xf32>
    %129 = vector.shape_cast %128 : vector<16xf32> to vector<16x1xf32>
    %130 = vector.broadcast %129 : vector<16x1xf32> to vector<16x16xf32>
    %131 = arith.subf %127, %130 : vector<16x16xf32>
    %132 = math.exp %131 : vector<16x16xf32>
    %cst_30 = arith.constant 0.000000e+00 : f32
    %133 = vector.broadcast %cst_30 : f32 to vector<16x16xf32>
    %134 = arith.select %14, %132, %133 : vector<16x16xi1>, vector<16x16xf32>
    %cst_31 = arith.constant dense<0.000000e+00> : vector<16xf32>
    %135 = vector.multi_reduction <add>, %134, %cst_31 [1] : vector<16x16xf32> to vector<16xf32>
    %136 = vector.shape_cast %135 : vector<16xf32> to vector<16x1xf32>
    %cst_32 = arith.constant 1.000000e-16 : f32
    %137 = vector.broadcast %cst_32 : f32 to vector<16x1xf32>
    %138 = arith.addf %136, %137 : vector<16x1xf32>
    %139 = tpu.reciprocal %138 : vector<16x1xf32> -> vector<16x1xf32>
    %140 = vector.broadcast %139 : vector<16x1xf32> to vector<16x16xf32>
    %141 = arith.mulf %134, %140 : vector<16x16xf32>
    %cst_33 = arith.constant dense<0.000000e+00> : vector<16x32xf32>
    %142 = tpu.matmul %141, %111, %cst_33 {dimension_numbers = #tpu.dot_dimension_numbers<[1], [0], [0], [1], [0, 0, 1, 1], [], []>} : vector<16x16xf32>, vector<16x32xf32>, vector<16x32xf32> -> vector<16x32xf32>
    %143 = vector.broadcast %10 : vector<1x32xf32> to vector<16x32xf32>
    %144 = arith.addf %142, %143 : vector<16x32xf32>
    %145 = vector.extract_strided_slice %19 {offsets = [256, 32], sizes = [256, 32], strides = [1, 1]} : vector<512x64xf32> to vector<256x32xf32>
    %146 = vector.shape_cast %145 : vector<256x32xf32> to vector<16x16x32xf32>
    %147 = vector.extract_strided_slice %107 {offsets = [16, 0], sizes = [16, 32], strides = [1, 1]} : vector<32x32xf32> to vector<16x32xf32>
    %148 = vector.extract_strided_slice %108 {offsets = [16, 0], sizes = [16, 32], strides = [1, 1]} : vector<32x32xf32> to vector<16x32xf32>
    %149 = vector.shape_cast %148 : vector<16x32xf32> to vector<16x1x32xf32>
    %150 = vector.shape_cast %147 : vector<16x32xf32> to vector<1x16x32xf32>
    %151 = vector.broadcast %149 : vector<16x1x32xf32> to vector<16x16x32xf32>
    %152 = vector.broadcast %150 : vector<1x16x32xf32> to vector<16x16x32xf32>
    %153 = arith.addf %151, %152 : vector<16x16x32xf32>
    %154 = arith.addf %153, %146 : vector<16x16x32xf32>
    %cst_34 = arith.constant 2.000000e-01 : f32
    %155 = vector.broadcast %cst_34 : f32 to vector<16x16x32xf32>
    %156 = arith.mulf %155, %154 : vector<16x16x32xf32>
    %157 = arith.maximumf %154, %156 : vector<16x16x32xf32>
    %158 = vector.shape_cast %8 : vector<1x32xf32> to vector<1x1x32xf32>
    %159 = vector.broadcast %158 : vector<1x1x32xf32> to vector<16x16x32xf32>
    %160 = arith.mulf %157, %159 : vector<16x16x32xf32>
    %cst_35 = arith.constant dense<0.000000e+00> : vector<16x16xf32>
    %161 = vector.multi_reduction <add>, %160, %cst_35 [2] : vector<16x16x32xf32> to vector<16x16xf32>
    %cst_36 = arith.constant -1.000000e+30 : f32
    %162 = vector.broadcast %cst_36 : f32 to vector<16x16xf32>
    %163 = arith.select %17, %161, %162 : vector<16x16xi1>, vector<16x16xf32>
    %cst_37 = arith.constant dense<0xFF800000> : vector<16xf32>
    %164 = vector.multi_reduction <maximumf>, %163, %cst_37 [1] : vector<16x16xf32> to vector<16xf32>
    %165 = vector.shape_cast %164 : vector<16xf32> to vector<16x1xf32>
    %166 = vector.broadcast %165 : vector<16x1xf32> to vector<16x16xf32>
    %167 = arith.subf %163, %166 : vector<16x16xf32>
    %168 = math.exp %167 : vector<16x16xf32>
    %cst_38 = arith.constant 0.000000e+00 : f32
    %169 = vector.broadcast %cst_38 : f32 to vector<16x16xf32>
    %170 = arith.select %17, %168, %169 : vector<16x16xi1>, vector<16x16xf32>
    %cst_39 = arith.constant dense<0.000000e+00> : vector<16xf32>
    %171 = vector.multi_reduction <add>, %170, %cst_39 [1] : vector<16x16xf32> to vector<16xf32>
    %172 = vector.shape_cast %171 : vector<16xf32> to vector<16x1xf32>
    %cst_40 = arith.constant 1.000000e-16 : f32
    %173 = vector.broadcast %cst_40 : f32 to vector<16x1xf32>
    %174 = arith.addf %172, %173 : vector<16x1xf32>
    %175 = tpu.reciprocal %174 : vector<16x1xf32> -> vector<16x1xf32>
    %176 = vector.broadcast %175 : vector<16x1xf32> to vector<16x16xf32>
    %177 = arith.mulf %170, %176 : vector<16x16xf32>
    %cst_41 = arith.constant dense<0.000000e+00> : vector<16x32xf32>
    %178 = tpu.matmul %177, %147, %cst_41 {dimension_numbers = #tpu.dot_dimension_numbers<[1], [0], [0], [1], [0, 0, 1, 1], [], []>} : vector<16x16xf32>, vector<16x32xf32>, vector<16x32xf32> -> vector<16x32xf32>
    %179 = vector.broadcast %10 : vector<1x32xf32> to vector<16x32xf32>
    %180 = arith.addf %178, %179 : vector<16x32xf32>
    %181 = tpu.concatenate %144, %180 in 0 : vector<16x32xf32>, vector<16x32xf32> -> vector<32x32xf32>
    %c0_42 = arith.constant 0 : index
    %c0_43 = arith.constant 0 : index
    %182 = vector.load %arg3[%c0_42, %c0_43] : memref<32x32xf32, #tpu.memory_space<vmem>>, vector<32x32xf32>
    tpu.vector_store %arg3[%c0_42, %c0_43], %181 {strides = array<i32>} : memref<32x32xf32, #tpu.memory_space<vmem>>, vector<32x32xf32>,
    return
  }
}

</mosaic_0001>

<llo_original>
// kernel: tpu_custom_call.1
$region0: #{tpu_custom_call.1}
  #allocation0 [shape = 'u32[]', space=smem, size = 0x4, offset = 0x4, fixed_abs, tag = 'smem constant byte address 0x4 - core index']
  #allocation1 [shape = 'u32[72,128]{1,0:T(1,128)}', space=vmem, size = 0x9000, scoped, tag = 'internal scratch']
  %s0 = inlined_call_operand.vmem [shape: f32[64,16], index: 0, kind: input, shape index: {}]
  %s1 = inlined_call_operand.vmem [shape: f32[512,8], index: 1, kind: input, shape index: {}]
  %s2 = inlined_call_operand.vmem [shape: f32[56,64], index: 2, kind: input, shape index: {}]
  %s3 = inlined_call_operand.hbm [shape: f32[32,32], index: 3, kind: output, shape index: {}]
  %s4 = sld [smem:[#allocation0]]
  $region22: #{tpu_custom_call.1} parent=0
    _
  %s6 = ssub.s32 1, %s4
  %s7 = scalar_select 0, %s6, %s4
  $region1: #{tpu_custom_call.1} parent=0
    #allocation2 [shape = 'u8[16384]{0}', space=vmem, size = 0x4000, scoped, tag = 'output window, operand 0, single buffered']
    #allocation3 [shape = 's32[1]{0}', space=sflag, size = 0x4, scoped, tag = 'scoped memory for tpu_custom_call.1']
    %8 = vsyncpa [#allocation3], 0
    // Predicated region
    $region2: #{tpu_custom_call.1} parent=1 // pred_check
      _
    $region3: #{tpu_custom_call.1} parent=1 // pred_check_branch
      %10 = sbr.rel (0) target = $region5
    $region4: #{tpu_custom_call.1} parent=1 // pred_region
      _
    $region5: #{tpu_custom_call.1} parent=1 // pred_fallthru
      _
    // Predicated region
    $region6: #{tpu_custom_call.1} parent=1 // pred_check
      _
    $region7: #{tpu_custom_call.1} parent=1 // pred_check_branch
      %12 = sbr.rel (0) target = $region9
    $region8: #{tpu_custom_call.1} parent=1 // pred_region
      _
    $region9: #{tpu_custom_call.1} parent=1 // pred_fallthru
      _
    // Predicated region
    $region10: #{tpu_custom_call.1} parent=1 // pred_check
      _
    $region11: #{tpu_custom_call.1} parent=1 // pred_check_branch
      %14 = sbr.rel (0) target = $region13
    $region12: #{tpu_custom_call.1} parent=1 // pred_region
      _
    $region13: #{tpu_custom_call.1} parent=1 // pred_fallthru
      _
    %v15 = vld [vmem:[%s0] sm:$0xff]
    %v16 = vld [vmem:[%s0 + $0x8] sm:$0xff]
    %v17 = vld [vmem:[%s0 + $0x10] sm:$0xff]
    %v18 = vld [vmem:[%s0 + $0x18] sm:$0xff]
    %v19 = vld [vmem:[%s0 + $0x20] sm:$0xff]
    %v20 = vld [vmem:[%s0 + $0x28] sm:$0xff]
    %v21 = vld [vmem:[%s0 + $0x30] sm:$0xff]
    %v22 = vld [vmem:[%s0 + $0x38] sm:$0xff]
    %v23 = vld [vmem:[%s2] sm:$0xff]
    %v24 = vld [vmem:[%s2 + $0x8] sm:$0xff]
    %v25 = vld [vmem:[%s2 + $0x10] sm:$0xff]
    %v26 = vld [vmem:[%s2 + $0x18] sm:$0xff]
    %v27 = vld [vmem:[%s2 + $0x20] sm:$0xff]
    %v28 = vld [vmem:[%s2 + $0x28] sm:$0xff]
    %v29 = vld [vmem:[%s2 + $0x30] sm:$0xff]
    %vm30 = vcmp.gt.f32.partialorder %v19, 0.0
    %vm31 = vcmp.gt.f32.partialorder %v20, 0.0
    %vm32 = vcmp.gt.f32.partialorder %v21, 0.0
    %vm33 = vcmp.gt.f32.partialorder %v22, 0.0
    %v34 = vld [vmem:[%s1] sm:$0xff]
    %v35 = vld [vmem:[%s1 + $0x8] sm:$0xff]
    %v36 = vld [vmem:[%s1 + $0x10] sm:$0xff]
    %v37 = vld [vmem:[%s1 + $0x18] sm:$0xff]
    %v38 = vld [vmem:[%s1 + $0x20] sm:$0xff]
    %v39 = vld [vmem:[%s1 + $0x28] sm:$0xff]
    %v40 = vld [vmem:[%s1 + $0x30] sm:$0xff]
    %v41 = vld [vmem:[%s1 + $0x38] sm:$0xff]
    %v42 = vld [vmem:[%s1 + $0x40] sm:$0xff]
    %v43 = vld [vmem:[%s1 + $0x48] sm:$0xff]
    %v44 = vld [vmem:[%s1 + $0x50] sm:$0xff]
    %v45 = vld [vmem:[%s1 + $0x58] sm:$0xff]
    %v46 = vld [vmem:[%s1 + $0x60] sm:$0xff]
    %v47 = vld [vmem:[%s1 + $0x68] sm:$0xff]
    %v48 = vld [vmem:[%s1 + $0x70] sm:$0xff]
    %v49 = vld [vmem:[%s1 + $0x78] sm:$0xff]
    %v50 = vld [vmem:[%s1 + $0x80] sm:$0xff]
    %v51 = vld [vmem:[%s1 + $0x88] sm:$0xff]
    %v52 = vld [vmem:[%s1 + $0x90] sm:$0xff]
    %v53 = vld [vmem:[%s1 + $0x98] sm:$0xff]
    %v54 = vld [vmem:[%s1 + $0xa0] sm:$0xff]
    %v55 = vld [vmem:[%s1 + $0xa8] sm:$0xff]
    %v56 = vld [vmem:[%s1 + $0xb0] sm:$0xff]
    %v57 = vld [vmem:[%s1 + $0xb8] sm:$0xff]
    %v58 = vld [vmem:[%s1 + $0xc0] sm:$0xff]
    %v59 = vld [vmem:[%s1 + $0xc8] sm:$0xff]
    %v60 = vld [vmem:[%s1 + $0xd0] sm:$0xff]
    %v61 = vld [vmem:[%s1 + $0xd8] sm:$0xff]
    %v62 = vld [vmem:[%s1 + $0xe0] sm:$0xff]
    %v63 = vld [vmem:[%s1 + $0xe8] sm:$0xff]
    %v64 = vld [vmem:[%s1 + $0xf0] sm:$0xff]
    %v65 = vld [vmem:[%s1 + $0xf8] sm:$0xff]
    %v66 = vld [vmem:[%s1 + $0x100] sm:$0xff]
    %v67 = vld [vmem:[%s1 + $0x108] sm:$0xff]
    %v68 = vld [vmem:[%s1 + $0x110] sm:$0xff]
    %v69 = vld [vmem:[%s1 + $0x118] sm:$0xff]
    %v70 = vld [vmem:[%s1 + $0x120] sm:$0xff]
    %v71 = vld [vmem:[%s1 + $0x128] sm:$0xff]
    %v72 = vld [vmem:[%s1 + $0x130] sm:$0xff]
    %v73 = vld [vmem:[%s1 + $0x138] sm:$0xff]
    %v74 = vld [vmem:[%s1 + $0x140] sm:$0xff]
    %v75 = vld [vmem:[%s1 + $0x148] sm:$0xff]
    %v76 = vld [vmem:[%s1 + $0x150] sm:$0xff]
    %v77 = vld [vmem:[%s1 + $0x158] sm:$0xff]
    %v78 = vld [vmem:[%s1 + $0x160] sm:$0xff]
    %v79 = vld [vmem:[%s1 + $0x168] sm:$0xff]
    %v80 = vld [vmem:[%s1 + $0x170] sm:$0xff]
    %v81 = vld [vmem:[%s1 + $0x178] sm:$0xff]
    %v82 = vld [vmem:[%s1 + $0x180] sm:$0xff]
    %v83 = vld [vmem:[%s1 + $0x188] sm:$0xff]
    %v84 = vld [vmem:[%s1 + $0x190] sm:$0xff]
    %v85 = vld [vmem:[%s1 + $0x198] sm:$0xff]
    %v86 = vld [vmem:[%s1 + $0x1a0] sm:$0xff]
    %v87 = vld [vmem:[%s1 + $0x1a8] sm:$0xff]
    %v88 = vld [vmem:[%s1 + $0x1b0] sm:$0xff]
    %v89 = vld [vmem:[%s1 + $0x1b8] sm:$0xff]
    %v90 = vld [vmem:[%s1 + $0x1c0] sm:$0xff]
    %v91 = vld [vmem:[%s1 + $0x1c8] sm:$0xff]
    %v92 = vld [vmem:[%s1 + $0x1d0] sm:$0xff]
    %v93 = vld [vmem:[%s1 + $0x1d8] sm:$0xff]
    %v94 = vld [vmem:[%s1 + $0x1e0] sm:$0xff]
    %v95 = vld [vmem:[%s1 + $0x1e8] sm:$0xff]
    %v96 = vld [vmem:[%s1 + $0x1f0] sm:$0xff]
    %v97 = vld [vmem:[%s1 + $0x1f8] sm:$0xff]
    %vm98 = vcmask 64512
    %v100 = vsel %vm98, %v34, 0
    %v103 = vsel %vm98, %v35, 0
    %v106 = vsel %vm98, %v36, 0
    %v109 = vsel %vm98, %v37, 0
    %v112 = vsel %vm98, %v38, 0
    %v115 = vsel %vm98, %v39, 0
    %v118 = vsel %vm98, %v40, 0
    %v121 = vsel %vm98, %v41, 0
    %v124 = vsel %vm98, %v42, 0
    %v127 = vsel %vm98, %v43, 0
    %v130 = vsel %vm98, %v44, 0
    %v133 = vsel %vm98, %v45, 0
    %v136 = vsel %vm98, %v46, 0
    %v139 = vsel %vm98, %v47, 0
    %v142 = vsel %vm98, %v48, 0
    %v145 = vsel %vm98, %v49, 0
    %v148 = vsel %vm98, %v50, 0
    %v151 = vsel %vm98, %v51, 0
    %v154 = vsel %vm98, %v52, 0
    %v157 = vsel %vm98, %v53, 0
    %v160 = vsel %vm98, %v54, 0
    %v163 = vsel %vm98, %v55, 0
    %v166 = vsel %vm98, %v56, 0
    %v169 = vsel %vm98, %v57, 0
    %v172 = vsel %vm98, %v58, 0
    %v175 = vsel %vm98, %v59, 0
    %v178 = vsel %vm98, %v60, 0
    %v181 = vsel %vm98, %v61, 0
    %v184 = vsel %vm98, %v62, 0
    %v187 = vsel %vm98, %v63, 0
    %v190 = vsel %vm98, %v64, 0
    %v193 = vsel %vm98, %v65, 0
    %v196 = vsel %vm98, %v66, 0
    %v199 = vsel %vm98, %v67, 0
    %v202 = vsel %vm98, %v68, 0
    %v205 = vsel %vm98, %v69, 0
    %v208 = vsel %vm98, %v70, 0
    %v211 = vsel %vm98, %v71, 0
    %v214 = vsel %vm98, %v72, 0
    %v217 = vsel %vm98, %v73, 0
    %v220 = vsel %vm98, %v74, 0
    %v223 = vsel %vm98, %v75, 0
    %v226 = vsel %vm98, %v76, 0
    %v229 = vsel %vm98, %v77, 0
    %v232 = vsel %vm98, %v78, 0
    %v235 = vsel %vm98, %v79, 0
    %v238 = vsel %vm98, %v80, 0
    %v241 = vsel %vm98, %v81, 0
    %v244 = vsel %vm98, %v82, 0
    %v247 = vsel %vm98, %v83, 0
    %v250 = vsel %vm98, %v84, 0
    %v253 = vsel %vm98, %v85, 0
    %v256 = vsel %vm98, %v86, 0
    %v259 = vsel %vm98, %v87, 0
    %v262 = vsel %vm98, %v88, 0
    %v265 = vsel %vm98, %v89, 0
    %v268 = vsel %vm98, %v90, 0
    %v271 = vsel %vm98, %v91, 0
    %v274 = vsel %vm98, %v92, 0
    %v277 = vsel %vm98, %v93, 0
    %v280 = vsel %vm98, %v94, 0
    %v283 = vsel %vm98, %v95, 0
    %v286 = vsel %vm98, %v96, 0
    %v289 = vsel %vm98, %v97, 0
    %291 = vmatpush.msra.mxu0 0.0
    %292 = vmatpush.msra.mxu0 0.0
    %293 = vmatpush.msra.mxu0 0.0
    %294 = vmatpush.msra.mxu0 0.0
    %295 = vmatpush.msra.mxu0 0.0
    %296 = vmatpush.msra.mxu0 0.0
    %297 = vmatpush.msra.mxu0 0.0
    %298 = vmatpush.msra.mxu0 0.0
    %299 = vmatpush.msra.mxu0 0.0
    %300 = vmatpush.msra.mxu0 0.0
    %301 = vmatpush.msra.mxu0 0.0
    %302 = vmatpush.msra.mxu0 0.0
    %303 = vmatpush.msra.mxu0 0.0
    %304 = vmatpush.msra.mxu0 0.0
    %305 = vmatpush.msra.mxu0 0.0
    %306 = vmatpush.msra.mxu0 %v28
    %307 = vmatmul.f32.gmra.mxu0 %v100
    %v308 = vpop.f32.mrf.mxu0
    %v309 = vadd.f32 0.0, %v308
    %310 = vmatmul.f32.gmra.mxu0 %v103
    %v311 = vpop.f32.mrf.mxu0
    %v312 = vadd.f32 0.0, %v311
    %313 = vmatmul.f32.gmra.mxu0 %v106
    %v314 = vpop.f32.mrf.mxu0
    %v315 = vadd.f32 0.0, %v314
    %316 = vmatmul.f32.gmra.mxu0 %v109
    %v317 = vpop.f32.mrf.mxu0
    %v318 = vadd.f32 0.0, %v317
    %319 = vmatmul.f32.gmra.mxu0 %v112
    %v320 = vpop.f32.mrf.mxu0
    %v321 = vadd.f32 0.0, %v320
    %322 = vmatmul.f32.gmra.mxu0 %v115
    %v323 = vpop.f32.mrf.mxu0
    %v324 = vadd.f32 0.0, %v323
    %325 = vmatmul.f32.gmra.mxu0 %v118
    %v326 = vpop.f32.mrf.mxu0
    %v327 = vadd.f32 0.0, %v326
    %328 = vmatmul.f32.gmra.mxu0 %v121
    %v329 = vpop.f32.mrf.mxu0
    %v330 = vadd.f32 0.0, %v329
    %331 = vmatmul.f32.gmra.mxu0 %v124
    %v332 = vpop.f32.mrf.mxu0
    %v333 = vadd.f32 0.0, %v332
    %334 = vmatmul.f32.gmra.mxu0 %v127
    %v335 = vpop.f32.mrf.mxu0
    %v336 = vadd.f32 0.0, %v335
    %337 = vmatmul.f32.gmra.mxu0 %v130
    %v338 = vpop.f32.mrf.mxu0
    %v339 = vadd.f32 0.0, %v338
    %340 = vmatmul.f32.gmra.mxu0 %v133
    %v341 = vpop.f32.mrf.mxu0
    %v342 = vadd.f32 0.0, %v341
    %343 = vmatmul.f32.gmra.mxu0 %v136
    %v344 = vpop.f32.mrf.mxu0
    %v345 = vadd.f32 0.0, %v344
    %346 = vmatmul.f32.gmra.mxu0 %v139
    %v347 = vpop.f32.mrf.mxu0
    %v348 = vadd.f32 0.0, %v347
    %349 = vmatmul.f32.gmra.mxu0 %v142
    %v350 = vpop.f32.mrf.mxu0
    %v351 = vadd.f32 0.0, %v350
    %352 = vmatmul.f32.gmra.mxu0 %v145
    %v353 = vpop.f32.mrf.mxu0
    %v354 = vadd.f32 0.0, %v353
    %355 = vmatmul.f32.gmra.mxu0 %v148
    %v356 = vpop.f32.mrf.mxu0
    %v357 = vadd.f32 0.0, %v356
    %358 = vmatmul.f32.gmra.mxu0 %v151
    %v359 = vpop.f32.mrf.mxu0
    %v360 = vadd.f32 0.0, %v359
    %361 = vmatmul.f32.gmra.mxu0 %v154
    %v362 = vpop.f32.mrf.mxu0
    %v363 = vadd.f32 0.0, %v362
    %364 = vmatmul.f32.gmra.mxu0 %v157
    %v365 = vpop.f32.mrf.mxu0
    %v366 = vadd.f32 0.0, %v365
    %367 = vmatmul.f32.gmra.mxu0 %v160
    %v368 = vpop.f32.mrf.mxu0
    %v369 = vadd.f32 0.0, %v368
    %370 = vmatmul.f32.gmra.mxu0 %v163
    %v371 = vpop.f32.mrf.mxu0
    %v372 = vadd.f32 0.0, %v371
    %373 = vmatmul.f32.gmra.mxu0 %v166
    %v374 = vpop.f32.mrf.mxu0
    %v375 = vadd.f32 0.0, %v374
    %376 = vmatmul.f32.gmra.mxu0 %v169
    %v377 = vpop.f32.mrf.mxu0
    %v378 = vadd.f32 0.0, %v377
    %379 = vmatmul.f32.gmra.mxu0 %v172
    %v380 = vpop.f32.mrf.mxu0
    %v381 = vadd.f32 0.0, %v380
    %382 = vmatmul.f32.gmra.mxu0 %v175
    %v383 = vpop.f32.mrf.mxu0
    %v384 = vadd.f32 0.0, %v383
    %385 = vmatmul.f32.gmra.mxu0 %v178
    %v386 = vpop.f32.mrf.mxu0
    %v387 = vadd.f32 0.0, %v386
    %388 = vmatmul.f32.gmra.mxu0 %v181
    %v389 = vpop.f32.mrf.mxu0
    %v390 = vadd.f32 0.0, %v389
    %391 = vmatmul.f32.gmra.mxu0 %v184
    %v392 = vpop.f32.mrf.mxu0
    %v393 = vadd.f32 0.0, %v392
    %394 = vmatmul.f32.gmra.mxu0 %v187
    %v395 = vpop.f32.mrf.mxu0
    %v396 = vadd.f32 0.0, %v395
    %397 = vmatmul.f32.gmra.mxu0 %v190
    %v398 = vpop.f32.mrf.mxu0
    %v399 = vadd.f32 0.0, %v398
    %400 = vmatmul.f32.gmra.mxu0 %v193
    %v401 = vpop.f32.mrf.mxu0
    %v402 = vadd.f32 0.0, %v401
    %403 = vmatmul.f32.gmra.mxu0 %v196
    %v404 = vpop.f32.mrf.mxu0
    %v405 = vadd.f32 0.0, %v404
    %406 = vmatmul.f32.gmra.mxu0 %v199
    %v407 = vpop.f32.mrf.mxu0
    %v408 = vadd.f32 0.0, %v407
    %409 = vmatmul.f32.gmra.mxu0 %v202
    %v410 = vpop.f32.mrf.mxu0
    %v411 = vadd.f32 0.0, %v410
    %412 = vmatmul.f32.gmra.mxu0 %v205
    %v413 = vpop.f32.mrf.mxu0
    %v414 = vadd.f32 0.0, %v413
    %415 = vmatmul.f32.gmra.mxu0 %v208
    %v416 = vpop.f32.mrf.mxu0
    %v417 = vadd.f32 0.0, %v416
    %418 = vmatmul.f32.gmra.mxu0 %v211
    %v419 = vpop.f32.mrf.mxu0
    %v420 = vadd.f32 0.0, %v419
    %421 = vmatmul.f32.gmra.mxu0 %v214
    %v422 = vpop.f32.mrf.mxu0
    %v423 = vadd.f32 0.0, %v422
    %424 = vmatmul.f32.gmra.mxu0 %v217
    %v425 = vpop.f32.mrf.mxu0
    %v426 = vadd.f32 0.0, %v425
    %427 = vmatmul.f32.gmra.mxu0 %v220
    %v428 = vpop.f32.mrf.mxu0
    %v429 = vadd.f32 0.0, %v428
    %430 = vmatmul.f32.gmra.mxu0 %v223
    %v431 = vpop.f32.mrf.mxu0
    %v432 = vadd.f32 0.0, %v431
    %433 = vmatmul.f32.gmra.mxu0 %v226
    %v434 = vpop.f32.mrf.mxu0
    %v435 = vadd.f32 0.0, %v434
    %436 = vmatmul.f32.gmra.mxu0 %v229
    %v437 = vpop.f32.mrf.mxu0
    %v438 = vadd.f32 0.0, %v437
    %439 = vmatmul.f32.gmra.mxu0 %v232
    %v440 = vpop.f32.mrf.mxu0
    %v441 = vadd.f32 0.0, %v440
    %442 = vmatmul.f32.gmra.mxu0 %v235
    %v443 = vpop.f32.mrf.mxu0
    %v444 = vadd.f32 0.0, %v443
    %445 = vmatmul.f32.gmra.mxu0 %v238
    %v446 = vpop.f32.mrf.mxu0
    %v447 = vadd.f32 0.0, %v446
    %448 = vmatmul.f32.gmra.mxu0 %v241
    %v449 = vpop.f32.mrf.mxu0
    %v450 = vadd.f32 0.0, %v449
    %451 = vmatmul.f32.gmra.mxu0 %v244
    %v452 = vpop.f32.mrf.mxu0
    %v453 = vadd.f32 0.0, %v452
    %454 = vmatmul.f32.gmra.mxu0 %v247
    %v455 = vpop.f32.mrf.mxu0
    %v456 = vadd.f32 0.0, %v455
    %457 = vmatmul.f32.gmra.mxu0 %v250
    %v458 = vpop.f32.mrf.mxu0
    %v459 = vadd.f32 0.0, %v458
    %460 = vmatmul.f32.gmra.mxu0 %v253
    %v461 = vpop.f32.mrf.mxu0
    %v462 = vadd.f32 0.0, %v461
    %463 = vmatmul.f32.gmra.mxu0 %v256
    %v464 = vpop.f32.mrf.mxu0
    %v465 = vadd.f32 0.0, %v464
    %466 = vmatmul.f32.gmra.mxu0 %v259
    %v467 = vpop.f32.mrf.mxu0
    %v468 = vadd.f32 0.0, %v467
    %469 = vmatmul.f32.gmra.mxu0 %v262
    %v470 = vpop.f32.mrf.mxu0
    %v471 = vadd.f32 0.0, %v470
    %472 = vmatmul.f32.gmra.mxu0 %v265
    %v473 = vpop.f32.mrf.mxu0
    %v474 = vadd.f32 0.0, %v473
    %475 = vmatmul.f32.gmra.mxu0 %v268
    %v476 = vpop.f32.mrf.mxu0
    %v477 = vadd.f32 0.0, %v476
    %478 = vmatmul.f32.gmra.mxu0 %v271
    %v479 = vpop.f32.mrf.mxu0
    %v480 = vadd.f32 0.0, %v479
    %481 = vmatmul.f32.gmra.mxu0 %v274
    %v482 = vpop.f32.mrf.mxu0
    %v483 = vadd.f32 0.0, %v482
    %484 = vmatmul.f32.gmra.mxu0 %v277
    %v485 = vpop.f32.mrf.mxu0
    %v486 = vadd.f32 0.0, %v485
    %487 = vmatmul.f32.gmra.mxu0 %v280
    %v488 = vpop.f32.mrf.mxu0
    %v489 = vadd.f32 0.0, %v488
    %490 = vmatmul.f32.gmra.mxu0 %v283
    %v491 = vpop.f32.mrf.mxu0
    %v492 = vadd.f32 0.0, %v491
    %493 = vmatmul.f32.gmra.mxu0 %v286
    %v494 = vpop.f32.mrf.mxu0
    %v495 = vadd.f32 0.0, %v494
    %496 = vmatmul.f32.gmra.mxu0 %v289
    %v497 = vpop.f32.mrf.mxu0
    %v498 = vadd.f32 0.0, %v497
    %499 = vdwg.mxu0
    %v500 = vperm.slane %v29, 0
    %v502 = vsel %vm98, %v15, 0
    %v505 = vsel %vm98, %v16, 0
    %v508 = vsel %vm98, %v17, 0
    %v511 = vsel %vm98, %v18, 0
    %513 = vmatpush.msra.mxu0 0.0
    %514 = vmatpush.msra.mxu0 0.0
    %515 = vmatpush.msra.mxu0 0.0
    %516 = vmatpush.msra.mxu0 0.0
    %517 = vmatpush.msra.mxu0 0.0
    %518 = vmatpush.msra.mxu0 0.0
    %519 = vmatpush.msra.mxu0 0.0
    %520 = vmatpush.msra.mxu0 0.0
    %521 = vmatpush.msra.mxu0 0.0
    %522 = vmatpush.msra.mxu0 0.0
    %523 = vmatpush.msra.mxu0 0.0
    %524 = vmatpush.msra.mxu0 0.0
    %525 = vmatpush.msra.mxu0 0.0
    %526 = vmatpush.msra.mxu0 0.0
    %527 = vmatpush.msra.mxu0 0.0
    %528 = vmatpush.msra.mxu0 %v23
    %529 = vmatmul.f32.gmra.mxu0 %v502
    %v530 = vpop.f32.mrf.mxu0
    %v531 = vadd.f32 %v500, %v530
    %532 = vmatmul.f32.gmra.mxu0 %v505
    %v533 = vpop.f32.mrf.mxu0
    %v534 = vadd.f32 %v500, %v533
    %535 = vmatmul.f32.gmra.mxu0 %v508
    %v536 = vpop.f32.mrf.mxu0
    %v537 = vadd.f32 %v500, %v536
    %538 = vmatmul.f32.gmra.mxu0 %v511
    %v539 = vpop.f32.mrf.mxu0
    %v540 = vadd.f32 %v500, %v539
    %541 = vdwg.mxu0
    %v544 = vrot.slane %v531, 1
    %v545 = vrot.slane %v531, 2
    %v546 = vrot.slane %v531, 3
    %v547 = vrot.slane %v531, 4
    %v548 = vrot.slane %v531, 5
    %v549 = vrot.slane %v531, 6
    %v550 = vrot.slane %v531, 7
    %v551 = vrot.slane %v534, 1
    %v552 = vrot.slane %v534, 2
    %v553 = vrot.slane %v534, 3
    %v554 = vrot.slane %v534, 4
    %v555 = vrot.slane %v534, 5
    %v556 = vrot.slane %v534, 6
    %v557 = vrot.slane %v534, 7
    %v558 = vperm.slane %v531, 0
    %v559 = vperm.slane %v544, 0
    %v560 = vperm.slane %v545, 0
    %v561 = vperm.slane %v546, 0
    %v562 = vperm.slane %v547, 0
    %v563 = vperm.slane %v548, 0
    %v564 = vperm.slane %v549, 0
    %v565 = vperm.slane %v550, 0
    %v566 = vperm.slane %v534, 0
    %v567 = vperm.slane %v551, 0
    %v568 = vperm.slane %v552, 0
    %v569 = vperm.slane %v553, 0
    %v570 = vperm.slane %v554, 0
    %v571 = vperm.slane %v555, 0
    %v572 = vperm.slane %v556, 0
    %v573 = vperm.slane %v557, 0
    %590 = vrot.lane.b32.xlu0 %v531, 32
    %v591 = vpop.permute.xlu0 %590
    %592 = vrot.lane.b32.xlu0 %v534, 32
    %v593 = vpop.permute.xlu0 %592
    %v596 = vadd.f32 %v558, %v591
    %v597 = vadd.f32 %v558, %v593
    %v598 = vadd.f32 %v559, %v591
    %v599 = vadd.f32 %v559, %v593
    %v600 = vadd.f32 %v560, %v591
    %v601 = vadd.f32 %v560, %v593
    %v602 = vadd.f32 %v561, %v591
    %v603 = vadd.f32 %v561, %v593
    %v604 = vadd.f32 %v562, %v591
    %v605 = vadd.f32 %v562, %v593
    %v606 = vadd.f32 %v563, %v591
    %v607 = vadd.f32 %v563, %v593
    %v608 = vadd.f32 %v564, %v591
    %v609 = vadd.f32 %v564, %v593
    %v610 = vadd.f32 %v565, %v591
    %v611 = vadd.f32 %v565, %v593
    %v612 = vadd.f32 %v566, %v591
    %v613 = vadd.f32 %v566, %v593
    %v614 = vadd.f32 %v567, %v591
    %v615 = vadd.f32 %v567, %v593
    %v616 = vadd.f32 %v568, %v591
    %v617 = vadd.f32 %v568, %v593
    %v618 = vadd.f32 %v569, %v591
    %v619 = vadd.f32 %v569, %v593
    %v620 = vadd.f32 %v570, %v591
    %v621 = vadd.f32 %v570, %v593
    %v622 = vadd.f32 %v571, %v591
    %v623 = vadd.f32 %v571, %v593
    %v624 = vadd.f32 %v572, %v591
    %v625 = vadd.f32 %v572, %v593
    %v626 = vadd.f32 %v573, %v591
    %v627 = vadd.f32 %v573, %v593
    %660 = vrot.lane.b32.xlu0 %v309, 32
    %v661 = vpop.permute.xlu0 %660
    %662 = vrot.lane.b32.xlu0 %v312, 32
    %v663 = vpop.permute.xlu0 %662
    %664 = vrot.lane.b32.xlu0 %v315, 32
    %v665 = vpop.permute.xlu0 %664
    %666 = vrot.lane.b32.xlu0 %v318, 32
    %v667 = vpop.permute.xlu0 %666
    %668 = vrot.lane.b32.xlu0 %v321, 32
    %v669 = vpop.permute.xlu0 %668
    %670 = vrot.lane.b32.xlu0 %v324, 32
    %v671 = vpop.permute.xlu0 %670
    %672 = vrot.lane.b32.xlu0 %v327, 32
    %v673 = vpop.permute.xlu0 %672
    %674 = vrot.lane.b32.xlu0 %v330, 32
    %v675 = vpop.permute.xlu0 %674
    %676 = vrot.lane.b32.xlu0 %v333, 32
    %v677 = vpop.permute.xlu0 %676
    %678 = vrot.lane.b32.xlu0 %v336, 32
    %v679 = vpop.permute.xlu0 %678
    %680 = vrot.lane.b32.xlu0 %v339, 32
    %v681 = vpop.permute.xlu0 %680
    %682 = vrot.lane.b32.xlu0 %v342, 32
    %v683 = vpop.permute.xlu0 %682
    %684 = vrot.lane.b32.xlu0 %v345, 32
    %v685 = vpop.permute.xlu0 %684
    %686 = vrot.lane.b32.xlu0 %v348, 32
    %v687 = vpop.permute.xlu0 %686
    %688 = vrot.lane.b32.xlu0 %v351, 32
    %v689 = vpop.permute.xlu0 %688
    %690 = vrot.lane.b32.xlu0 %v354, 32
    %v691 = vpop.permute.xlu0 %690
    %692 = vrot.lane.b32.xlu0 %v357, 32
    %v693 = vpop.permute.xlu0 %692
    %694 = vrot.lane.b32.xlu0 %v360, 32
    %v695 = vpop.permute.xlu0 %694
    %696 = vrot.lane.b32.xlu0 %v363, 32
    %v697 = vpop.permute.xlu0 %696
    %698 = vrot.lane.b32.xlu0 %v366, 32
    %v699 = vpop.permute.xlu0 %698
    %700 = vrot.lane.b32.xlu0 %v369, 32
    %v701 = vpop.permute.xlu0 %700
    %702 = vrot.lane.b32.xlu0 %v372, 32
    %v703 = vpop.permute.xlu0 %702
    %704 = vrot.lane.b32.xlu0 %v375, 32
    %v705 = vpop.permute.xlu0 %704
    %706 = vrot.lane.b32.xlu0 %v378, 32
    %v707 = vpop.permute.xlu0 %706
    %708 = vrot.lane.b32.xlu0 %v381, 32
    %v709 = vpop.permute.xlu0 %708
    %710 = vrot.lane.b32.xlu0 %v384, 32
    %v711 = vpop.permute.xlu0 %710
    %712 = vrot.lane.b32.xlu0 %v387, 32
    %v713 = vpop.permute.xlu0 %712
    %714 = vrot.lane.b32.xlu0 %v390, 32
    %v715 = vpop.permute.xlu0 %714
    %716 = vrot.lane.b32.xlu0 %v393, 32
    %v717 = vpop.permute.xlu0 %716
    %718 = vrot.lane.b32.xlu0 %v396, 32
    %v719 = vpop.permute.xlu0 %718
    %720 = vrot.lane.b32.xlu0 %v399, 32
    %v721 = vpop.permute.xlu0 %720
    %722 = vrot.lane.b32.xlu0 %v402, 32
    %v723 = vpop.permute.xlu0 %722
    %v756 = vadd.f32 %v596, %v661
    %v757 = vadd.f32 %v597, %v663
    %v758 = vadd.f32 %v598, %v665
    %v759 = vadd.f32 %v599, %v667
    %v760 = vadd.f32 %v600, %v669
    %v761 = vadd.f32 %v601, %v671
    %v762 = vadd.f32 %v602, %v673
    %v763 = vadd.f32 %v603, %v675
    %v764 = vadd.f32 %v604, %v677
    %v765 = vadd.f32 %v605, %v679
    %v766 = vadd.f32 %v606, %v681
    %v767 = vadd.f32 %v607, %v683
    %v768 = vadd.f32 %v608, %v685
    %v769 = vadd.f32 %v609, %v687
    %v770 = vadd.f32 %v610, %v689
    %v771 = vadd.f32 %v611, %v691
    %v772 = vadd.f32 %v612, %v693
    %v773 = vadd.f32 %v613, %v695
    %v774 = vadd.f32 %v614, %v697
    %v775 = vadd.f32 %v615, %v699
    %v776 = vadd.f32 %v616, %v701
    %v777 = vadd.f32 %v617, %v703
    %v778 = vadd.f32 %v618, %v705
    %v779 = vadd.f32 %v619, %v707
    %v780 = vadd.f32 %v620, %v709
    %v781 = vadd.f32 %v621, %v711
    %v782 = vadd.f32 %v622, %v713
    %v783 = vadd.f32 %v623, %v715
    %v784 = vadd.f32 %v624, %v717
    %v785 = vadd.f32 %v625, %v719
    %v786 = vadd.f32 %v626, %v721
    %v787 = vadd.f32 %v627, %v723
    %v788 = vmul.f32 %v756, 0.2
    %v789 = vmul.f32 %v757, 0.2
    %v790 = vmul.f32 %v758, 0.2
    %v791 = vmul.f32 %v759, 0.2
    %v792 = vmul.f32 %v760, 0.2
    %v793 = vmul.f32 %v761, 0.2
    %v794 = vmul.f32 %v762, 0.2
    %v795 = vmul.f32 %v763, 0.2
    %v796 = vmul.f32 %v764, 0.2
    %v797 = vmul.f32 %v765, 0.2
    %v798 = vmul.f32 %v766, 0.2
    %v799 = vmul.f32 %v767, 0.2
    %v800 = vmul.f32 %v768, 0.2
    %v801 = vmul.f32 %v769, 0.2
    %v802 = vmul.f32 %v770, 0.2
    %v803 = vmul.f32 %v771, 0.2
    %v804 = vmul.f32 %v772, 0.2
    %v805 = vmul.f32 %v773, 0.2
    %v806 = vmul.f32 %v774, 0.2
    %v807 = vmul.f32 %v775, 0.2
    %v808 = vmul.f32 %v776, 0.2
    %v809 = vmul.f32 %v777, 0.2
    %v810 = vmul.f32 %v778, 0.2
    %v811 = vmul.f32 %v779, 0.2
    %v812 = vmul.f32 %v780, 0.2
    %v813 = vmul.f32 %v781, 0.2
    %v814 = vmul.f32 %v782, 0.2
    %v815 = vmul.f32 %v783, 0.2
    %v816 = vmul.f32 %v784, 0.2
    %v817 = vmul.f32 %v785, 0.2
    %v818 = vmul.f32 %v786, 0.2
    %v819 = vmul.f32 %v787, 0.2
    %v820 = vmax.f32 %v756, %v788
    %v821 = vmax.f32 %v757, %v789
    %v822 = vmax.f32 %v758, %v790
    %v823 = vmax.f32 %v759, %v791
    %v824 = vmax.f32 %v760, %v792
    %v825 = vmax.f32 %v761, %v793
    %v826 = vmax.f32 %v762, %v794
    %v827 = vmax.f32 %v763, %v795
    %v828 = vmax.f32 %v764, %v796
    %v829 = vmax.f32 %v765, %v797
    %v830 = vmax.f32 %v766, %v798
    %v831 = vmax.f32 %v767, %v799
    %v832 = vmax.f32 %v768, %v800
    %v833 = vmax.f32 %v769, %v801
    %v834 = vmax.f32 %v770, %v802
    %v835 = vmax.f32 %v771, %v803
    %v836 = vmax.f32 %v772, %v804
    %v837 = vmax.f32 %v773, %v805
    %v838 = vmax.f32 %v774, %v806
    %v839 = vmax.f32 %v775, %v807
    %v840 = vmax.f32 %v776, %v808
    %v841 = vmax.f32 %v777, %v809
    %v842 = vmax.f32 %v778, %v810
    %v843 = vmax.f32 %v779, %v811
    %v844 = vmax.f32 %v780, %v812
    %v845 = vmax.f32 %v781, %v813
    %v846 = vmax.f32 %v782, %v814
    %v847 = vmax.f32 %v783, %v815
    %v848 = vmax.f32 %v784, %v816
    %v849 = vmax.f32 %v785, %v817
    %v850 = vmax.f32 %v786, %v818
    %v851 = vmax.f32 %v787, %v819
    %v852 = vperm.slane %v29, 2
    %854 = vrot.lane.b32.xlu0 %v852, 32
    %v855 = vpop.permute.xlu0 %854
    %v857 = vmul.f32 %v820, %v855
    %v858 = vmul.f32 %v821, %v855
    %v859 = vmul.f32 %v822, %v855
    %v860 = vmul.f32 %v823, %v855
    %v861 = vmul.f32 %v824, %v855
    %v862 = vmul.f32 %v825, %v855
    %v863 = vmul.f32 %v826, %v855
    %v864 = vmul.f32 %v827, %v855
    %v865 = vmul.f32 %v828, %v855
    %v866 = vmul.f32 %v829, %v855
    %v867 = vmul.f32 %v830, %v855
    %v868 = vmul.f32 %v831, %v855
    %v869 = vmul.f32 %v832, %v855
    %v870 = vmul.f32 %v833, %v855
    %v871 = vmul.f32 %v834, %v855
    %v872 = vmul.f32 %v835, %v855
    %v873 = vmul.f32 %v836, %v855
    %v874 = vmul.f32 %v837, %v855
    %v875 = vmul.f32 %v838, %v855
    %v876 = vmul.f32 %v839, %v855
    %v877 = vmul.f32 %v840, %v855
    %v878 = vmul.f32 %v841, %v855
    %v879 = vmul.f32 %v842, %v855
    %v880 = vmul.f32 %v843, %v855
    %v881 = vmul.f32 %v844, %v855
    %v882 = vmul.f32 %v845, %v855
    %v883 = vmul.f32 %v846, %v855
    %v884 = vmul.f32 %v847, %v855
    %v885 = vmul.f32 %v848, %v855
    %v886 = vmul.f32 %v849, %v855
    %v887 = vmul.f32 %v850, %v855
    %v888 = vmul.f32 %v851, %v855
    %921 = vrot.lane.b32.xlu0 %v857, 96
    %v922 = vpop.permute.xlu0 %921
    %923 = vrot.lane.b32.xlu0 %v858, 96
    %v924 = vpop.permute.xlu0 %923
    %925 = vrot.lane.b32.xlu0 %v859, 96
    %v926 = vpop.permute.xlu0 %925
    %927 = vrot.lane.b32.xlu0 %v860, 96
    %v928 = vpop.permute.xlu0 %927
    %929 = vrot.lane.b32.xlu0 %v861, 96
    %v930 = vpop.permute.xlu0 %929
    %931 = vrot.lane.b32.xlu0 %v862, 96
    %v932 = vpop.permute.xlu0 %931
    %933 = vrot.lane.b32.xlu0 %v863, 96
    %v934 = vpop.permute.xlu0 %933
    %935 = vrot.lane.b32.xlu0 %v864, 96
    %v936 = vpop.permute.xlu0 %935
    %937 = vrot.lane.b32.xlu0 %v865, 96
    %v938 = vpop.permute.xlu0 %937
    %939 = vrot.lane.b32.xlu0 %v866, 96
    %v940 = vpop.permute.xlu0 %939
    %941 = vrot.lane.b32.xlu0 %v867, 96
    %v942 = vpop.permute.xlu0 %941
    %943 = vrot.lane.b32.xlu0 %v868, 96
    %v944 = vpop.permute.xlu0 %943
    %945 = vrot.lane.b32.xlu0 %v869, 96
    %v946 = vpop.permute.xlu0 %945
    %947 = vrot.lane.b32.xlu0 %v870, 96
    %v948 = vpop.permute.xlu0 %947
    %949 = vrot.lane.b32.xlu0 %v871, 96
    %v950 = vpop.permute.xlu0 %949
    %951 = vrot.lane.b32.xlu0 %v872, 96
    %v952 = vpop.permute.xlu0 %951
    %953 = vrot.lane.b32.xlu0 %v873, 96
    %v954 = vpop.permute.xlu0 %953
    %955 = vrot.lane.b32.xlu0 %v874, 96
    %v956 = vpop.permute.xlu0 %955
    %957 = vrot.lane.b32.xlu0 %v875, 96
    %v958 = vpop.permute.xlu0 %957
    %959 = vrot.lane.b32.xlu0 %v876, 96
    %v960 = vpop.permute.xlu0 %959
    %961 = vrot.lane.b32.xlu0 %v877, 96
    %v962 = vpop.permute.xlu0 %961
    %963 = vrot.lane.b32.xlu0 %v878, 96
    %v964 = vpop.permute.xlu0 %963
    %965 = vrot.lane.b32.xlu0 %v879, 96
    %v966 = vpop.permute.xlu0 %965
    %967 = vrot.lane.b32.xlu0 %v880, 96
    %v968 = vpop.permute.xlu0 %967
    %969 = vrot.lane.b32.xlu0 %v881, 96
    %v970 = vpop.permute.xlu0 %969
    %971 = vrot.lane.b32.xlu0 %v882, 96
    %v972 = vpop.permute.xlu0 %971
    %973 = vrot.lane.b32.xlu0 %v883, 96
    %v974 = vpop.permute.xlu0 %973
    %975 = vrot.lane.b32.xlu0 %v884, 96
    %v976 = vpop.permute.xlu0 %975
    %977 = vrot.lane.b32.xlu0 %v885, 96
    %v978 = vpop.permute.xlu0 %977
    %979 = vrot.lane.b32.xlu0 %v886, 96
    %v980 = vpop.permute.xlu0 %979
    %981 = vrot.lane.b32.xlu0 %v887, 96
    %v982 = vpop.permute.xlu0 %981
    %983 = vrot.lane.b32.xlu0 %v888, 96
    %v984 = vpop.permute.xlu0 %983
    %vm1017 = vcmask 261120
    %v1018 = vsel %vm1017, %v922, 0.0
    %1019 = vadd.xlane.f32.xlu0 %v1018
    %v1020 = vpop.xlane.xlu0 %1019
    %v1021 = vsel %vm1017, %v924, 0.0
    %1022 = vadd.xlane.f32.xlu0 %v1021
    %v1023 = vpop.xlane.xlu0 %1022
    %v1024 = vsel %vm1017, %v926, 0.0
    %1025 = vadd.xlane.f32.xlu0 %v1024
    %v1026 = vpop.xlane.xlu0 %1025
    %v1027 = vsel %vm1017, %v928, 0.0
    %1028 = vadd.xlane.f32.xlu0 %v1027
    %v1029 = vpop.xlane.xlu0 %1028
    %v1030 = vsel %vm1017, %v930, 0.0
    %1031 = vadd.xlane.f32.xlu0 %v1030
    %v1032 = vpop.xlane.xlu0 %1031
    %v1033 = vsel %vm1017, %v932, 0.0
    %1034 = vadd.xlane.f32.xlu0 %v1033
    %v1035 = vpop.xlane.xlu0 %1034
    %v1036 = vsel %vm1017, %v934, 0.0
    %1037 = vadd.xlane.f32.xlu0 %v1036
    %v1038 = vpop.xlane.xlu0 %1037
    %v1039 = vsel %vm1017, %v936, 0.0
    %1040 = vadd.xlane.f32.xlu0 %v1039
    %v1041 = vpop.xlane.xlu0 %1040
    %v1042 = vsel %vm1017, %v938, 0.0
    %1043 = vadd.xlane.f32.xlu0 %v1042
    %v1044 = vpop.xlane.xlu0 %1043
    %v1045 = vsel %vm1017, %v940, 0.0
    %1046 = vadd.xlane.f32.xlu0 %v1045
    %v1047 = vpop.xlane.xlu0 %1046
    %v1048 = vsel %vm1017, %v942, 0.0
    %1049 = vadd.xlane.f32.xlu0 %v1048
    %v1050 = vpop.xlane.xlu0 %1049
    %v1051 = vsel %vm1017, %v944, 0.0
    %1052 = vadd.xlane.f32.xlu0 %v1051
    %v1053 = vpop.xlane.xlu0 %1052
    %v1054 = vsel %vm1017, %v946, 0.0
    %1055 = vadd.xlane.f32.xlu0 %v1054
    %v1056 = vpop.xlane.xlu0 %1055
    %v1057 = vsel %vm1017, %v948, 0.0
    %1058 = vadd.xlane.f32.xlu0 %v1057
    %v1059 = vpop.xlane.xlu0 %1058
    %v1060 = vsel %vm1017, %v950, 0.0
    %1061 = vadd.xlane.f32.xlu0 %v1060
    %v1062 = vpop.xlane.xlu0 %1061
    %v1063 = vsel %vm1017, %v952, 0.0
    %1064 = vadd.xlane.f32.xlu0 %v1063
    %v1065 = vpop.xlane.xlu0 %1064
    %v1066 = vsel %vm1017, %v954, 0.0
    %1067 = vadd.xlane.f32.xlu0 %v1066
    %v1068 = vpop.xlane.xlu0 %1067
    %v1069 = vsel %vm1017, %v956, 0.0
    %1070 = vadd.xlane.f32.xlu0 %v1069
    %v1071 = vpop.xlane.xlu0 %1070
    %v1072 = vsel %vm1017, %v958, 0.0
    %1073 = vadd.xlane.f32.xlu0 %v1072
    %v1074 = vpop.xlane.xlu0 %1073
    %v1075 = vsel %vm1017, %v960, 0.0
    %1076 = vadd.xlane.f32.xlu0 %v1075
    %v1077 = vpop.xlane.xlu0 %1076
    %v1078 = vsel %vm1017, %v962, 0.0
    %1079 = vadd.xlane.f32.xlu0 %v1078
    %v1080 = vpop.xlane.xlu0 %1079
    %v1081 = vsel %vm1017, %v964, 0.0
    %1082 = vadd.xlane.f32.xlu0 %v1081
    %v1083 = vpop.xlane.xlu0 %1082
    %v1084 = vsel %vm1017, %v966, 0.0
    %1085 = vadd.xlane.f32.xlu0 %v1084
    %v1086 = vpop.xlane.xlu0 %1085
    %v1087 = vsel %vm1017, %v968, 0.0
    %1088 = vadd.xlane.f32.xlu0 %v1087
    %v1089 = vpop.xlane.xlu0 %1088
    %v1090 = vsel %vm1017, %v970, 0.0
    %1091 = vadd.xlane.f32.xlu0 %v1090
    %v1092 = vpop.xlane.xlu0 %1091
    %v1093 = vsel %vm1017, %v972, 0.0
    %1094 = vadd.xlane.f32.xlu0 %v1093
    %v1095 = vpop.xlane.xlu0 %1094
    %v1096 = vsel %vm1017, %v974, 0.0
    %1097 = vadd.xlane.f32.xlu0 %v1096
    %v1098 = vpop.xlane.xlu0 %1097
    %v1099 = vsel %vm1017, %v976, 0.0
    %1100 = vadd.xlane.f32.xlu0 %v1099
    %v1101 = vpop.xlane.xlu0 %1100
    %v1102 = vsel %vm1017, %v978, 0.0
    %1103 = vadd.xlane.f32.xlu0 %v1102
    %v1104 = vpop.xlane.xlu0 %1103
    %v1105 = vsel %vm1017, %v980, 0.0
    %1106 = vadd.xlane.f32.xlu0 %v1105
    %v1107 = vpop.xlane.xlu0 %1106
    %v1108 = vsel %vm1017, %v982, 0.0
    %1109 = vadd.xlane.f32.xlu0 %v1108
    %v1110 = vpop.xlane.xlu0 %1109
    %v1111 = vsel %vm1017, %v984, 0.0
    %1112 = vadd.xlane.f32.xlu0 %v1111
    %v1113 = vpop.xlane.xlu0 %1112
    %v1146 = vlaneseq
    %v1147 = vand.u32 %v1146, 127
    %v1148 = vperm.slane %v1020, %v1147
    %v1149 = vadd.s32 %v1147, 4294967288
    %v1150 = vperm.slane %v1023, %v1149
    %vm1151 = vcmask 130112
    %v1152 = vsel %vm1151, %v1150, %v1148
    %v1153 = vperm.slane %v1026, %v1147
    %v1154 = vperm.slane %v1029, %v1149
    %v1155 = vsel %vm1151, %v1154, %v1153
    %v1156 = vperm.slane %v1032, %v1147
    %v1157 = vperm.slane %v1035, %v1149
    %v1158 = vsel %vm1151, %v1157, %v1156
    %v1159 = vperm.slane %v1038, %v1147
    %v1160 = vperm.slane %v1041, %v1149
    %v1161 = vsel %vm1151, %v1160, %v1159
    %v1162 = vperm.slane %v1044, %v1147
    %v1163 = vperm.slane %v1047, %v1149
    %v1164 = vsel %vm1151, %v1163, %v1162
    %v1165 = vperm.slane %v1050, %v1147
    %v1166 = vperm.slane %v1053, %v1149
    %v1167 = vsel %vm1151, %v1166, %v1165
    %v1168 = vperm.slane %v1056, %v1147
    %v1169 = vperm.slane %v1059, %v1149
    %v1170 = vsel %vm1151, %v1169, %v1168
    %v1171 = vperm.slane %v1062, %v1147
    %v1172 = vperm.slane %v1065, %v1149
    %v1173 = vsel %vm1151, %v1172, %v1171
    %v1174 = vperm.slane %v1068, %v1147
    %v1175 = vperm.slane %v1071, %v1149
    %v1176 = vsel %vm1151, %v1175, %v1174
    %v1177 = vperm.slane %v1074, %v1147
    %v1178 = vperm.slane %v1077, %v1149
    %v1179 = vsel %vm1151, %v1178, %v1177
    %v1180 = vperm.slane %v1080, %v1147
    %v1181 = vperm.slane %v1083, %v1149
    %v1182 = vsel %vm1151, %v1181, %v1180
    %v1183 = vperm.slane %v1086, %v1147
    %v1184 = vperm.slane %v1089, %v1149
    %v1185 = vsel %vm1151, %v1184, %v1183
    %v1186 = vperm.slane %v1092, %v1147
    %v1187 = vperm.slane %v1095, %v1149
    %v1188 = vsel %vm1151, %v1187, %v1186
    %v1189 = vperm.slane %v1098, %v1147
    %v1190 = vperm.slane %v1101, %v1149
    %v1191 = vsel %vm1151, %v1190, %v1189
    %v1192 = vperm.slane %v1104, %v1147
    %v1193 = vperm.slane %v1107, %v1149
    %v1194 = vsel %vm1151, %v1193, %v1192
    %v1195 = vperm.slane %v1110, %v1147
    %v1196 = vperm.slane %v1113, %v1149
    %v1197 = vsel %vm1151, %v1196, %v1195
    %vm1198 = vcmask 1041409
    %v1199 = vsel %vm1198, %v1155, %v1152
    %vm1200 = vcmask 1042434
    %v1201 = vsel %vm1200, %v1158, %v1199
    %vm1202 = vcmask 1043459
    %v1203 = vsel %vm1202, %v1161, %v1201
    %vm1204 = vcmask 1044484
    %v1205 = vsel %vm1204, %v1164, %v1203
    %vm1206 = vcmask 1045509
    %v1207 = vsel %vm1206, %v1167, %v1205
    %vm1208 = vcmask 1046534
    %v1209 = vsel %vm1208, %v1170, %v1207
    %vm1210 = vcmask 1047559
    %v1211 = vsel %vm1210, %v1173, %v1209
    %v1212 = vsel %vm1198, %v1179, %v1176
    %v1213 = vsel %vm1200, %v1182, %v1212
    %v1214 = vsel %vm1202, %v1185, %v1213
    %v1215 = vsel %vm1204, %v1188, %v1214
    %v1216 = vsel %vm1206, %v1191, %v1215
    %v1217 = vsel %vm1208, %v1194, %v1216
    %v1218 = vsel %vm1210, %v1197, %v1217
    %v1221 = vsel %vm30, %v1211, -1e+30
    %v1222 = vsel %vm31, %v1218, -1e+30
    %vm1223 = vcmask 130048
    %v1224 = vsel %vm1223, %v1221, -inf
    %1225 = vmax.xlane.f32.xlu0 %v1224
    %v1226 = vpop.xlane.xlu0 %1225
    %v1227 = vsel %vm1223, %v1222, -inf
    %1228 = vmax.xlane.f32.xlu0 %v1227
    %v1229 = vpop.xlane.xlu0 %1228
    %v1230 = vsub.f32 %v1221, %v1226
    %v1231 = vsub.f32 %v1222, %v1229
    %v1232 = vmul.f32 %v1230, 1.442695
    %v1233 = vpow.pop %v1232
    %v1234 = vmul.f32 %v1231, 1.442695
    %v1235 = vpow.pop %v1234
    %v1236 = vsel %vm30, %v1233, 0.0
    %v1237 = vsel %vm31, %v1235, 0.0
    %v1238 = vsel %vm1223, %v1236, 0.0
    %1239 = vadd.xlane.f32.xlu0 %v1238
    %v1240 = vpop.xlane.xlu0 %1239
    %v1241 = vsel %vm1223, %v1237, 0.0
    %1242 = vadd.xlane.f32.xlu0 %v1241
    %v1243 = vpop.xlane.xlu0 %1242
    %v1244 = vadd.f32 %v1240, 1e-16
    %v1245 = vadd.f32 %v1243, 1e-16
    %v1246 = vrcp.pop %v1244
    %v1247 = vmul.f32 %v1244, %v1246
    %v1248 = vsub.f32 1.0, %v1247
    %v1249 = vmul.f32 %v1246, %v1248
    %v1250 = vadd.f32 %v1246, %v1249
    %vm1251 = vweird.f32 %v1244
    %vm1252 = vweird.f32 %v1246
    %vm1253 = vmor %vm1251, %vm1252
    %v1254 = vsel %vm1253, %v1246, %v1250
    %v1255 = vand.u32 2147483647, %v1244
    %vm1256 = vcmp.eq.f32.partialorder %v1255, 8.507059e+37
    %v1257 = vand.u32 %v1244, 2147483648
    %v1258 = vor.u32 1.1754944e-38, %v1257
    %v1259 = vsel %vm1256, %v1258, %v1254
    %v1260 = vrcp.pop %v1245
    %v1261 = vmul.f32 %v1245, %v1260
    %v1262 = vsub.f32 1.0, %v1261
    %v1263 = vmul.f32 %v1260, %v1262
    %v1264 = vadd.f32 %v1260, %v1263
    %vm1265 = vweird.f32 %v1245
    %vm1266 = vweird.f32 %v1260
    %vm1267 = vmor %vm1265, %vm1266
    %v1268 = vsel %vm1267, %v1260, %v1264
    %v1269 = vand.u32 2147483647, %v1245
    %vm1270 = vcmp.eq.f32.partialorder %v1269, 8.507059e+37
    %v1271 = vand.u32 %v1245, 2147483648
    %v1272 = vor.u32 1.1754944e-38, %v1271
    %v1273 = vsel %vm1270, %v1272, %v1268
    %v1274 = vmul.f32 %v1236, %v1259
    %v1275 = vmul.f32 %v1237, %v1273
    %v1276 = vperm.slane %v29, 3
    %v1278 = vsel %vm1223, %v1274, 0
    %v1281 = vsel %vm1223, %v1275, 0
    %1283 = vmatpush.msra.mxu0 0.0
    %1284 = vmatpush.msra.mxu0 0.0
    %1285 = vmatpush.msra.mxu0 0.0
    %1286 = vmatpush.msra.mxu0 0.0
    %1287 = vmatpush.msra.mxu0 0.0
    %1288 = vmatpush.msra.mxu0 0.0
    %1289 = vmatpush.msra.mxu0 0.0
    %1290 = vmatpush.msra.mxu0 0.0
    %1291 = vmatpush.msra.mxu0 0.0
    %1292 = vmatpush.msra.mxu0 0.0
    %1293 = vmatpush.msra.mxu0 0.0
    %1294 = vmatpush.msra.mxu0 0.0
    %1295 = vmatpush.msra.mxu0 0.0
    %1296 = vmatpush.msra.mxu0 0.0
    %1297 = vmatpush.msra.mxu0 %v534
    %1298 = vmatpush.msra.mxu0 %v531
    %1299 = vmatmul.f32.gmra.mxu0 %v1278
    %v1300 = vpop.f32.mrf.mxu0
    %v1301 = vadd.f32 %v1276, %v1300
    %1302 = vmatmul.f32.gmra.mxu0 %v1281
    %v1303 = vpop.f32.mrf.mxu0
    %v1304 = vadd.f32 %v1276, %v1303
    %1305 = vdwg.mxu0
    %v1308 = vrot.slane %v537, 1
    %v1309 = vrot.slane %v537, 2
    %v1310 = vrot.slane %v537, 3
    %v1311 = vrot.slane %v537, 4
    %v1312 = vrot.slane %v537, 5
    %v1313 = vrot.slane %v537, 6
    %v1314 = vrot.slane %v537, 7
    %v1315 = vrot.slane %v540, 1
    %v1316 = vrot.slane %v540, 2
    %v1317 = vrot.slane %v540, 3
    %v1318 = vrot.slane %v540, 4
    %v1319 = vrot.slane %v540, 5
    %v1320 = vrot.slane %v540, 6
    %v1321 = vrot.slane %v540, 7
    %v1322 = vperm.slane %v537, 0
    %v1323 = vperm.slane %v1308, 0
    %v1324 = vperm.slane %v1309, 0
    %v1325 = vperm.slane %v1310, 0
    %v1326 = vperm.slane %v1311, 0
    %v1327 = vperm.slane %v1312, 0
    %v1328 = vperm.slane %v1313, 0
    %v1329 = vperm.slane %v1314, 0
    %v1330 = vperm.slane %v540, 0
    %v1331 = vperm.slane %v1315, 0
    %v1332 = vperm.slane %v1316, 0
    %v1333 = vperm.slane %v1317, 0
    %v1334 = vperm.slane %v1318, 0
    %v1335 = vperm.slane %v1319, 0
    %v1336 = vperm.slane %v1320, 0
    %v1337 = vperm.slane %v1321, 0
    %1354 = vrot.lane.b32.xlu0 %v537, 32
    %v1355 = vpop.permute.xlu0 %1354
    %1356 = vrot.lane.b32.xlu0 %v540, 32
    %v1357 = vpop.permute.xlu0 %1356
    %v1360 = vadd.f32 %v1322, %v1355
    %v1361 = vadd.f32 %v1322, %v1357
    %v1362 = vadd.f32 %v1323, %v1355
    %v1363 = vadd.f32 %v1323, %v1357
    %v1364 = vadd.f32 %v1324, %v1355
    %v1365 = vadd.f32 %v1324, %v1357
    %v1366 = vadd.f32 %v1325, %v1355
    %v1367 = vadd.f32 %v1325, %v1357
    %v1368 = vadd.f32 %v1326, %v1355
    %v1369 = vadd.f32 %v1326, %v1357
    %v1370 = vadd.f32 %v1327, %v1355
    %v1371 = vadd.f32 %v1327, %v1357
    %v1372 = vadd.f32 %v1328, %v1355
    %v1373 = vadd.f32 %v1328, %v1357
    %v1374 = vadd.f32 %v1329, %v1355
    %v1375 = vadd.f32 %v1329, %v1357
    %v1376 = vadd.f32 %v1330, %v1355
    %v1377 = vadd.f32 %v1330, %v1357
    %v1378 = vadd.f32 %v1331, %v1355
    %v1379 = vadd.f32 %v1331, %v1357
    %v1380 = vadd.f32 %v1332, %v1355
    %v1381 = vadd.f32 %v1332, %v1357
    %v1382 = vadd.f32 %v1333, %v1355
    %v1383 = vadd.f32 %v1333, %v1357
    %v1384 = vadd.f32 %v1334, %v1355
    %v1385 = vadd.f32 %v1334, %v1357
    %v1386 = vadd.f32 %v1335, %v1355
    %v1387 = vadd.f32 %v1335, %v1357
    %v1388 = vadd.f32 %v1336, %v1355
    %v1389 = vadd.f32 %v1336, %v1357
    %v1390 = vadd.f32 %v1337, %v1355
    %v1391 = vadd.f32 %v1337, %v1357
    %1424 = vrot.lane.b32.xlu0 %v405, 32
    %v1425 = vpop.permute.xlu0 %1424
    %1426 = vrot.lane.b32.xlu0 %v408, 32
    %v1427 = vpop.permute.xlu0 %1426
    %1428 = vrot.lane.b32.xlu0 %v411, 32
    %v1429 = vpop.permute.xlu0 %1428
    %1430 = vrot.lane.b32.xlu0 %v414, 32
    %v1431 = vpop.permute.xlu0 %1430
    %1432 = vrot.lane.b32.xlu0 %v417, 32
    %v1433 = vpop.permute.xlu0 %1432
    %1434 = vrot.lane.b32.xlu0 %v420, 32
    %v1435 = vpop.permute.xlu0 %1434
    %1436 = vrot.lane.b32.xlu0 %v423, 32
    %v1437 = vpop.permute.xlu0 %1436
    %1438 = vrot.lane.b32.xlu0 %v426, 32
    %v1439 = vpop.permute.xlu0 %1438
    %1440 = vrot.lane.b32.xlu0 %v429, 32
    %v1441 = vpop.permute.xlu0 %1440
    %1442 = vrot.lane.b32.xlu0 %v432, 32
    %v1443 = vpop.permute.xlu0 %1442
    %1444 = vrot.lane.b32.xlu0 %v435, 32
    %v1445 = vpop.permute.xlu0 %1444
    %1446 = vrot.lane.b32.xlu0 %v438, 32
    %v1447 = vpop.permute.xlu0 %1446
    %1448 = vrot.lane.b32.xlu0 %v441, 32
    %v1449 = vpop.permute.xlu0 %1448
    %1450 = vrot.lane.b32.xlu0 %v444, 32
    %v1451 = vpop.permute.xlu0 %1450
    %1452 = vrot.lane.b32.xlu0 %v447, 32
    %v1453 = vpop.permute.xlu0 %1452
    %1454 = vrot.lane.b32.xlu0 %v450, 32
    %v1455 = vpop.permute.xlu0 %1454
    %1456 = vrot.lane.b32.xlu0 %v453, 32
    %v1457 = vpop.permute.xlu0 %1456
    %1458 = vrot.lane.b32.xlu0 %v456, 32
    %v1459 = vpop.permute.xlu0 %1458
    %1460 = vrot.lane.b32.xlu0 %v459, 32
    %v1461 = vpop.permute.xlu0 %1460
    %1462 = vrot.lane.b32.xlu0 %v462, 32
    %v1463 = vpop.permute.xlu0 %1462
    %1464 = vrot.lane.b32.xlu0 %v465, 32
    %v1465 = vpop.permute.xlu0 %1464
    %1466 = vrot.lane.b32.xlu0 %v468, 32
    %v1467 = vpop.permute.xlu0 %1466
    %1468 = vrot.lane.b32.xlu0 %v471, 32
    %v1469 = vpop.permute.xlu0 %1468
    %1470 = vrot.lane.b32.xlu0 %v474, 32
    %v1471 = vpop.permute.xlu0 %1470
    %1472 = vrot.lane.b32.xlu0 %v477, 32
    %v1473 = vpop.permute.xlu0 %1472
    %1474 = vrot.lane.b32.xlu0 %v480, 32
    %v1475 = vpop.permute.xlu0 %1474
    %1476 = vrot.lane.b32.xlu0 %v483, 32
    %v1477 = vpop.permute.xlu0 %1476
    %1478 = vrot.lane.b32.xlu0 %v486, 32
    %v1479 = vpop.permute.xlu0 %1478
    %1480 = vrot.lane.b32.xlu0 %v489, 32
    %v1481 = vpop.permute.xlu0 %1480
    %1482 = vrot.lane.b32.xlu0 %v492, 32
    %v1483 = vpop.permute.xlu0 %1482
    %1484 = vrot.lane.b32.xlu0 %v495, 32
    %v1485 = vpop.permute.xlu0 %1484
    %1486 = vrot.lane.b32.xlu0 %v498, 32
    %v1487 = vpop.permute.xlu0 %1486
    %v1520 = vadd.f32 %v1360, %v1425
    %v1521 = vadd.f32 %v1361, %v1427
    %v1522 = vadd.f32 %v1362, %v1429
    %v1523 = vadd.f32 %v1363, %v1431
    %v1524 = vadd.f32 %v1364, %v1433
    %v1525 = vadd.f32 %v1365, %v1435
    %v1526 = vadd.f32 %v1366, %v1437
    %v1527 = vadd.f32 %v1367, %v1439
    %v1528 = vadd.f32 %v1368, %v1441
    %v1529 = vadd.f32 %v1369, %v1443
    %v1530 = vadd.f32 %v1370, %v1445
    %v1531 = vadd.f32 %v1371, %v1447
    %v1532 = vadd.f32 %v1372, %v1449
    %v1533 = vadd.f32 %v1373, %v1451
    %v1534 = vadd.f32 %v1374, %v1453
    %v1535 = vadd.f32 %v1375, %v1455
    %v1536 = vadd.f32 %v1376, %v1457
    %v1537 = vadd.f32 %v1377, %v1459
    %v1538 = vadd.f32 %v1378, %v1461
    %v1539 = vadd.f32 %v1379, %v1463
    %v1540 = vadd.f32 %v1380, %v1465
    %v1541 = vadd.f32 %v1381, %v1467
    %v1542 = vadd.f32 %v1382, %v1469
    %v1543 = vadd.f32 %v1383, %v1471
    %v1544 = vadd.f32 %v1384, %v1473
    %v1545 = vadd.f32 %v1385, %v1475
    %v1546 = vadd.f32 %v1386, %v1477
    %v1547 = vadd.f32 %v1387, %v1479
    %v1548 = vadd.f32 %v1388, %v1481
    %v1549 = vadd.f32 %v1389, %v1483
    %v1550 = vadd.f32 %v1390, %v1485
    %v1551 = vadd.f32 %v1391, %v1487
    %v1552 = vmul.f32 %v1520, 0.2
    %v1553 = vmul.f32 %v1521, 0.2
    %v1554 = vmul.f32 %v1522, 0.2
    %v1555 = vmul.f32 %v1523, 0.2
    %v1556 = vmul.f32 %v1524, 0.2
    %v1557 = vmul.f32 %v1525, 0.2
    %v1558 = vmul.f32 %v1526, 0.2
    %v1559 = vmul.f32 %v1527, 0.2
    %v1560 = vmul.f32 %v1528, 0.2
    %v1561 = vmul.f32 %v1529, 0.2
    %v1562 = vmul.f32 %v1530, 0.2
    %v1563 = vmul.f32 %v1531, 0.2
    %v1564 = vmul.f32 %v1532, 0.2
    %v1565 = vmul.f32 %v1533, 0.2
    %v1566 = vmul.f32 %v1534, 0.2
    %v1567 = vmul.f32 %v1535, 0.2
    %v1568 = vmul.f32 %v1536, 0.2
    %v1569 = vmul.f32 %v1537, 0.2
    %v1570 = vmul.f32 %v1538, 0.2
    %v1571 = vmul.f32 %v1539, 0.2
    %v1572 = vmul.f32 %v1540, 0.2
    %v1573 = vmul.f32 %v1541, 0.2
    %v1574 = vmul.f32 %v1542, 0.2
    %v1575 = vmul.f32 %v1543, 0.2
    %v1576 = vmul.f32 %v1544, 0.2
    %v1577 = vmul.f32 %v1545, 0.2
    %v1578 = vmul.f32 %v1546, 0.2
    %v1579 = vmul.f32 %v1547, 0.2
    %v1580 = vmul.f32 %v1548, 0.2
    %v1581 = vmul.f32 %v1549, 0.2
    %v1582 = vmul.f32 %v1550, 0.2
    %v1583 = vmul.f32 %v1551, 0.2
    %v1584 = vmax.f32 %v1520, %v1552
    %v1585 = vmax.f32 %v1521, %v1553
    %v1586 = vmax.f32 %v1522, %v1554
    %v1587 = vmax.f32 %v1523, %v1555
    %v1588 = vmax.f32 %v1524, %v1556
    %v1589 = vmax.f32 %v1525, %v1557
    %v1590 = vmax.f32 %v1526, %v1558
    %v1591 = vmax.f32 %v1527, %v1559
    %v1592 = vmax.f32 %v1528, %v1560
    %v1593 = vmax.f32 %v1529, %v1561
    %v1594 = vmax.f32 %v1530, %v1562
    %v1595 = vmax.f32 %v1531, %v1563
    %v1596 = vmax.f32 %v1532, %v1564
    %v1597 = vmax.f32 %v1533, %v1565
    %v1598 = vmax.f32 %v1534, %v1566
    %v1599 = vmax.f32 %v1535, %v1567
    %v1600 = vmax.f32 %v1536, %v1568
    %v1601 = vmax.f32 %v1537, %v1569
    %v1602 = vmax.f32 %v1538, %v1570
    %v1603 = vmax.f32 %v1539, %v1571
    %v1604 = vmax.f32 %v1540, %v1572
    %v1605 = vmax.f32 %v1541, %v1573
    %v1606 = vmax.f32 %v1542, %v1574
    %v1607 = vmax.f32 %v1543, %v1575
    %v1608 = vmax.f32 %v1544, %v1576
    %v1609 = vmax.f32 %v1545, %v1577
    %v1610 = vmax.f32 %v1546, %v1578
    %v1611 = vmax.f32 %v1547, %v1579
    %v1612 = vmax.f32 %v1548, %v1580
    %v1613 = vmax.f32 %v1549, %v1581
    %v1614 = vmax.f32 %v1550, %v1582
    %v1615 = vmax.f32 %v1551, %v1583
    %v1616 = vmul.f32 %v1584, %v855
    %v1617 = vmul.f32 %v1585, %v855
    %v1618 = vmul.f32 %v1586, %v855
    %v1619 = vmul.f32 %v1587, %v855
    %v1620 = vmul.f32 %v1588, %v855
    %v1621 = vmul.f32 %v1589, %v855
    %v1622 = vmul.f32 %v1590, %v855
    %v1623 = vmul.f32 %v1591, %v855
    %v1624 = vmul.f32 %v1592, %v855
    %v1625 = vmul.f32 %v1593, %v855
    %v1626 = vmul.f32 %v1594, %v855
    %v1627 = vmul.f32 %v1595, %v855
    %v1628 = vmul.f32 %v1596, %v855
    %v1629 = vmul.f32 %v1597, %v855
    %v1630 = vmul.f32 %v1598, %v855
    %v1631 = vmul.f32 %v1599, %v855
    %v1632 = vmul.f32 %v1600, %v855
    %v1633 = vmul.f32 %v1601, %v855
    %v1634 = vmul.f32 %v1602, %v855
    %v1635 = vmul.f32 %v1603, %v855
    %v1636 = vmul.f32 %v1604, %v855
    %v1637 = vmul.f32 %v1605, %v855
    %v1638 = vmul.f32 %v1606, %v855
    %v1639 = vmul.f32 %v1607, %v855
    %v1640 = vmul.f32 %v1608, %v855
    %v1641 = vmul.f32 %v1609, %v855
    %v1642 = vmul.f32 %v1610, %v855
    %v1643 = vmul.f32 %v1611, %v855
    %v1644 = vmul.f32 %v1612, %v855
    %v1645 = vmul.f32 %v1613, %v855
    %v1646 = vmul.f32 %v1614, %v855
    %v1647 = vmul.f32 %v1615, %v855
    %1680 = vrot.lane.b32.xlu0 %v1616, 96
    %v1681 = vpop.permute.xlu0 %1680
    %1682 = vrot.lane.b32.xlu0 %v1617, 96
    %v1683 = vpop.permute.xlu0 %1682
    %1684 = vrot.lane.b32.xlu0 %v1618, 96
    %v1685 = vpop.permute.xlu0 %1684
    %1686 = vrot.lane.b32.xlu0 %v1619, 96
    %v1687 = vpop.permute.xlu0 %1686
    %1688 = vrot.lane.b32.xlu0 %v1620, 96
    %v1689 = vpop.permute.xlu0 %1688
    %1690 = vrot.lane.b32.xlu0 %v1621, 96
    %v1691 = vpop.permute.xlu0 %1690
    %1692 = vrot.lane.b32.xlu0 %v1622, 96
    %v1693 = vpop.permute.xlu0 %1692
    %1694 = vrot.lane.b32.xlu0 %v1623, 96
    %v1695 = vpop.permute.xlu0 %1694
    %1696 = vrot.lane.b32.xlu0 %v1624, 96
    %v1697 = vpop.permute.xlu0 %1696
    %1698 = vrot.lane.b32.xlu0 %v1625, 96
    %v1699 = vpop.permute.xlu0 %1698
    %1700 = vrot.lane.b32.xlu0 %v1626, 96
    %v1701 = vpop.permute.xlu0 %1700
    %1702 = vrot.lane.b32.xlu0 %v1627, 96
    %v1703 = vpop.permute.xlu0 %1702
    %1704 = vrot.lane.b32.xlu0 %v1628, 96
    %v1705 = vpop.permute.xlu0 %1704
    %1706 = vrot.lane.b32.xlu0 %v1629, 96
    %v1707 = vpop.permute.xlu0 %1706
    %1708 = vrot.lane.b32.xlu0 %v1630, 96
    %v1709 = vpop.permute.xlu0 %1708
    %1710 = vrot.lane.b32.xlu0 %v1631, 96
    %v1711 = vpop.permute.xlu0 %1710
    %1712 = vrot.lane.b32.xlu0 %v1632, 96
    %v1713 = vpop.permute.xlu0 %1712
    %1714 = vrot.lane.b32.xlu0 %v1633, 96
    %v1715 = vpop.permute.xlu0 %1714
    %1716 = vrot.lane.b32.xlu0 %v1634, 96
    %v1717 = vpop.permute.xlu0 %1716
    %1718 = vrot.lane.b32.xlu0 %v1635, 96
    %v1719 = vpop.permute.xlu0 %1718
    %1720 = vrot.lane.b32.xlu0 %v1636, 96
    %v1721 = vpop.permute.xlu0 %1720
    %1722 = vrot.lane.b32.xlu0 %v1637, 96
    %v1723 = vpop.permute.xlu0 %1722
    %1724 = vrot.lane.b32.xlu0 %v1638, 96
    %v1725 = vpop.permute.xlu0 %1724
    %1726 = vrot.lane.b32.xlu0 %v1639, 96
    %v1727 = vpop.permute.xlu0 %1726
    %1728 = vrot.lane.b32.xlu0 %v1640, 96
    %v1729 = vpop.permute.xlu0 %1728
    %1730 = vrot.lane.b32.xlu0 %v1641, 96
    %v1731 = vpop.permute.xlu0 %1730
    %1732 = vrot.lane.b32.xlu0 %v1642, 96
    %v1733 = vpop.permute.xlu0 %1732
    %1734 = vrot.lane.b32.xlu0 %v1643, 96
    %v1735 = vpop.permute.xlu0 %1734
    %1736 = vrot.lane.b32.xlu0 %v1644, 96
    %v1737 = vpop.permute.xlu0 %1736
    %1738 = vrot.lane.b32.xlu0 %v1645, 96
    %v1739 = vpop.permute.xlu0 %1738
    %1740 = vrot.lane.b32.xlu0 %v1646, 96
    %v1741 = vpop.permute.xlu0 %1740
    %1742 = vrot.lane.b32.xlu0 %v1647, 96
    %v1743 = vpop.permute.xlu0 %1742
    %v1776 = vsel %vm1017, %v1681, 0.0
    %1777 = vadd.xlane.f32.xlu0 %v1776
    %v1778 = vpop.xlane.xlu0 %1777
    %v1779 = vsel %vm1017, %v1683, 0.0
    %1780 = vadd.xlane.f32.xlu0 %v1779
    %v1781 = vpop.xlane.xlu0 %1780
    %v1782 = vsel %vm1017, %v1685, 0.0
    %1783 = vadd.xlane.f32.xlu0 %v1782
    %v1784 = vpop.xlane.xlu0 %1783
    %v1785 = vsel %vm1017, %v1687, 0.0
    %1786 = vadd.xlane.f32.xlu0 %v1785
    %v1787 = vpop.xlane.xlu0 %1786
    %v1788 = vsel %vm1017, %v1689, 0.0
    %1789 = vadd.xlane.f32.xlu0 %v1788
    %v1790 = vpop.xlane.xlu0 %1789
    %v1791 = vsel %vm1017, %v1691, 0.0
    %1792 = vadd.xlane.f32.xlu0 %v1791
    %v1793 = vpop.xlane.xlu0 %1792
    %v1794 = vsel %vm1017, %v1693, 0.0
    %1795 = vadd.xlane.f32.xlu0 %v1794
    %v1796 = vpop.xlane.xlu0 %1795
    %v1797 = vsel %vm1017, %v1695, 0.0
    %1798 = vadd.xlane.f32.xlu0 %v1797
    %v1799 = vpop.xlane.xlu0 %1798
    %v1800 = vsel %vm1017, %v1697, 0.0
    %1801 = vadd.xlane.f32.xlu0 %v1800
    %v1802 = vpop.xlane.xlu0 %1801
    %v1803 = vsel %vm1017, %v1699, 0.0
    %1804 = vadd.xlane.f32.xlu0 %v1803
    %v1805 = vpop.xlane.xlu0 %1804
    %v1806 = vsel %vm1017, %v1701, 0.0
    %1807 = vadd.xlane.f32.xlu0 %v1806
    %v1808 = vpop.xlane.xlu0 %1807
    %v1809 = vsel %vm1017, %v1703, 0.0
    %1810 = vadd.xlane.f32.xlu0 %v1809
    %v1811 = vpop.xlane.xlu0 %1810
    %v1812 = vsel %vm1017, %v1705, 0.0
    %1813 = vadd.xlane.f32.xlu0 %v1812
    %v1814 = vpop.xlane.xlu0 %1813
    %v1815 = vsel %vm1017, %v1707, 0.0
    %1816 = vadd.xlane.f32.xlu0 %v1815
    %v1817 = vpop.xlane.xlu0 %1816
    %v1818 = vsel %vm1017, %v1709, 0.0
    %1819 = vadd.xlane.f32.xlu0 %v1818
    %v1820 = vpop.xlane.xlu0 %1819
    %v1821 = vsel %vm1017, %v1711, 0.0
    %1822 = vadd.xlane.f32.xlu0 %v1821
    %v1823 = vpop.xlane.xlu0 %1822
    %v1824 = vsel %vm1017, %v1713, 0.0
    %1825 = vadd.xlane.f32.xlu0 %v1824
    %v1826 = vpop.xlane.xlu0 %1825
    %v1827 = vsel %vm1017, %v1715, 0.0
    %1828 = vadd.xlane.f32.xlu0 %v1827
    %v1829 = vpop.xlane.xlu0 %1828
    %v1830 = vsel %vm1017, %v1717, 0.0
    %1831 = vadd.xlane.f32.xlu0 %v1830
    %v1832 = vpop.xlane.xlu0 %1831
    %v1833 = vsel %vm1017, %v1719, 0.0
    %1834 = vadd.xlane.f32.xlu0 %v1833
    %v1835 = vpop.xlane.xlu0 %1834
    %v1836 = vsel %vm1017, %v1721, 0.0
    %1837 = vadd.xlane.f32.xlu0 %v1836
    %v1838 = vpop.xlane.xlu0 %1837
    %v1839 = vsel %vm1017, %v1723, 0.0
    %1840 = vadd.xlane.f32.xlu0 %v1839
    %v1841 = vpop.xlane.xlu0 %1840
    %v1842 = vsel %vm1017, %v1725, 0.0
    %1843 = vadd.xlane.f32.xlu0 %v1842
    %v1844 = vpop.xlane.xlu0 %1843
    %v1845 = vsel %vm1017, %v1727, 0.0
    %1846 = vadd.xlane.f32.xlu0 %v1845
    %v1847 = vpop.xlane.xlu0 %1846
    %v1848 = vsel %vm1017, %v1729, 0.0
    %1849 = vadd.xlane.f32.xlu0 %v1848
    %v1850 = vpop.xlane.xlu0 %1849
    %v1851 = vsel %vm1017, %v1731, 0.0
    %1852 = vadd.xlane.f32.xlu0 %v1851
    %v1853 = vpop.xlane.xlu0 %1852
    %v1854 = vsel %vm1017, %v1733, 0.0
    %1855 = vadd.xlane.f32.xlu0 %v1854
    %v1856 = vpop.xlane.xlu0 %1855
    %v1857 = vsel %vm1017, %v1735, 0.0
    %1858 = vadd.xlane.f32.xlu0 %v1857
    %v1859 = vpop.xlane.xlu0 %1858
    %v1860 = vsel %vm1017, %v1737, 0.0
    %1861 = vadd.xlane.f32.xlu0 %v1860
    %v1862 = vpop.xlane.xlu0 %1861
    %v1863 = vsel %vm1017, %v1739, 0.0
    %1864 = vadd.xlane.f32.xlu0 %v1863
    %v1865 = vpop.xlane.xlu0 %1864
    %v1866 = vsel %vm1017, %v1741, 0.0
    %1867 = vadd.xlane.f32.xlu0 %v1866
    %v1868 = vpop.xlane.xlu0 %1867
    %v1869 = vsel %vm1017, %v1743, 0.0
    %1870 = vadd.xlane.f32.xlu0 %v1869
    %v1871 = vpop.xlane.xlu0 %1870
    %v1904 = vperm.slane %v1778, %v1147
    %v1905 = vperm.slane %v1781, %v1149
    %v1906 = vsel %vm1151, %v1905, %v1904
    %v1907 = vperm.slane %v1784, %v1147
    %v1908 = vperm.slane %v1787, %v1149
    %v1909 = vsel %vm1151, %v1908, %v1907
    %v1910 = vperm.slane %v1790, %v1147
    %v1911 = vperm.slane %v1793, %v1149
    %v1912 = vsel %vm1151, %v1911, %v1910
    %v1913 = vperm.slane %v1796, %v1147
    %v1914 = vperm.slane %v1799, %v1149
    %v1915 = vsel %vm1151, %v1914, %v1913
    %v1916 = vperm.slane %v1802, %v1147
    %v1917 = vperm.slane %v1805, %v1149
    %v1918 = vsel %vm1151, %v1917, %v1916
    %v1919 = vperm.slane %v1808, %v1147
    %v1920 = vperm.slane %v1811, %v1149
    %v1921 = vsel %vm1151, %v1920, %v1919
    %v1922 = vperm.slane %v1814, %v1147
    %v1923 = vperm.slane %v1817, %v1149
    %v1924 = vsel %vm1151, %v1923, %v1922
    %v1925 = vperm.slane %v1820, %v1147
    %v1926 = vperm.slane %v1823, %v1149
    %v1927 = vsel %vm1151, %v1926, %v1925
    %v1928 = vperm.slane %v1826, %v1147
    %v1929 = vperm.slane %v1829, %v1149
    %v1930 = vsel %vm1151, %v1929, %v1928
    %v1931 = vperm.slane %v1832, %v1147
    %v1932 = vperm.slane %v1835, %v1149
    %v1933 = vsel %vm1151, %v1932, %v1931
    %v1934 = vperm.slane %v1838, %v1147
    %v1935 = vperm.slane %v1841, %v1149
    %v1936 = vsel %vm1151, %v1935, %v1934
    %v1937 = vperm.slane %v1844, %v1147
    %v1938 = vperm.slane %v1847, %v1149
    %v1939 = vsel %vm1151, %v1938, %v1937
    %v1940 = vperm.slane %v1850, %v1147
    %v1941 = vperm.slane %v1853, %v1149
    %v1942 = vsel %vm1151, %v1941, %v1940
    %v1943 = vperm.slane %v1856, %v1147
    %v1944 = vperm.slane %v1859, %v1149
    %v1945 = vsel %vm1151, %v1944, %v1943
    %v1946 = vperm.slane %v1862, %v1147
    %v1947 = vperm.slane %v1865, %v1149
    %v1948 = vsel %vm1151, %v1947, %v1946
    %v1949 = vperm.slane %v1868, %v1147
    %v1950 = vperm.slane %v1871, %v1149
    %v1951 = vsel %vm1151, %v1950, %v1949
    %v1952 = vsel %vm1198, %v1909, %v1906
    %v1953 = vsel %vm1200, %v1912, %v1952
    %v1954 = vsel %vm1202, %v1915, %v1953
    %v1955 = vsel %vm1204, %v1918, %v1954
    %v1956 = vsel %vm1206, %v1921, %v1955
    %v1957 = vsel %vm1208, %v1924, %v1956
    %v1958 = vsel %vm1210, %v1927, %v1957
    %v1959 = vsel %vm1198, %v1933, %v1930
    %v1960 = vsel %vm1200, %v1936, %v1959
    %v1961 = vsel %vm1202, %v1939, %v1960
    %v1962 = vsel %vm1204, %v1942, %v1961
    %v1963 = vsel %vm1206, %v1945, %v1962
    %v1964 = vsel %vm1208, %v1948, %v1963
    %v1965 = vsel %vm1210, %v1951, %v1964
    %v1968 = vsel %vm32, %v1958, -1e+30
    %v1969 = vsel %vm33, %v1965, -1e+30
    %v1970 = vsel %vm1223, %v1968, -inf
    %1971 = vmax.xlane.f32.xlu0 %v1970
    %v1972 = vpop.xlane.xlu0 %1971
    %v1973 = vsel %vm1223, %v1969, -inf
    %1974 = vmax.xlane.f32.xlu0 %v1973
    %v1975 = vpop.xlane.xlu0 %1974
    %v1976 = vsub.f32 %v1968, %v1972
    %v1977 = vsub.f32 %v1969, %v1975
    %v1978 = vmul.f32 %v1976, 1.442695
    %v1979 = vpow.pop %v1978
    %v1980 = vmul.f32 %v1977, 1.442695
    %v1981 = vpow.pop %v1980
    %v1982 = vsel %vm32, %v1979, 0.0
    %v1983 = vsel %vm33, %v1981, 0.0
    %v1984 = vsel %vm1223, %v1982, 0.0
    %1985 = vadd.xlane.f32.xlu0 %v1984
    %v1986 = vpop.xlane.xlu0 %1985
    %v1987 = vsel %vm1223, %v1983, 0.0
    %1988 = vadd.xlane.f32.xlu0 %v1987
    %v1989 = vpop.xlane.xlu0 %1988
    %v1990 = vadd.f32 %v1986, 1e-16
    %v1991 = vadd.f32 %v1989, 1e-16
    %v1992 = vrcp.pop %v1990
    %v1993 = vmul.f32 %v1990, %v1992
    %v1994 = vsub.f32 1.0, %v1993
    %v1995 = vmul.f32 %v1992, %v1994
    %v1996 = vadd.f32 %v1992, %v1995
    %vm1997 = vweird.f32 %v1990
    %vm1998 = vweird.f32 %v1992
    %vm1999 = vmor %vm1997, %vm1998
    %v2000 = vsel %vm1999, %v1992, %v1996
    %v2001 = vand.u32 2147483647, %v1990
    %vm2002 = vcmp.eq.f32.partialorder %v2001, 8.507059e+37
    %v2003 = vand.u32 %v1990, 2147483648
    %v2004 = vor.u32 1.1754944e-38, %v2003
    %v2005 = vsel %vm2002, %v2004, %v2000
    %v2006 = vrcp.pop %v1991
    %v2007 = vmul.f32 %v1991, %v2006
    %v2008 = vsub.f32 1.0, %v2007
    %v2009 = vmul.f32 %v2006, %v2008
    %v2010 = vadd.f32 %v2006, %v2009
    %vm2011 = vweird.f32 %v1991
    %vm2012 = vweird.f32 %v2006
    %vm2013 = vmor %vm2011, %vm2012
    %v2014 = vsel %vm2013, %v2006, %v2010
    %v2015 = vand.u32 2147483647, %v1991
    %vm2016 = vcmp.eq.f32.partialorder %v2015, 8.507059e+37
    %v2017 = vand.u32 %v1991, 2147483648
    %v2018 = vor.u32 1.1754944e-38, %v2017
    %v2019 = vsel %vm2016, %v2018, %v2014
    %v2020 = vmul.f32 %v1982, %v2005
    %v2021 = vmul.f32 %v1983, %v2019
    %v2023 = vsel %vm1223, %v2020, 0
    %v2026 = vsel %vm1223, %v2021, 0
    %2028 = vmatpush.msra.mxu0 0.0
    %2029 = vmatpush.msra.mxu0 0.0
    %2030 = vmatpush.msra.mxu0 0.0
    %2031 = vmatpush.msra.mxu0 0.0
    %2032 = vmatpush.msra.mxu0 0.0
    %2033 = vmatpush.msra.mxu0 0.0
    %2034 = vmatpush.msra.mxu0 0.0
    %2035 = vmatpush.msra.mxu0 0.0
    %2036 = vmatpush.msra.mxu0 0.0
    %2037 = vmatpush.msra.mxu0 0.0
    %2038 = vmatpush.msra.mxu0 0.0
    %2039 = vmatpush.msra.mxu0 0.0
    %2040 = vmatpush.msra.mxu0 0.0
    %2041 = vmatpush.msra.mxu0 0.0
    %2042 = vmatpush.msra.mxu0 %v540
    %2043 = vmatpush.msra.mxu0 %v537
    %2044 = vmatmul.f32.gmra.mxu0 %v2023
    %v2045 = vpop.f32.mrf.mxu0
    %v2046 = vadd.f32 %v1276, %v2045
    %2047 = vmatmul.f32.gmra.mxu0 %v2026
    %v2048 = vpop.f32.mrf.mxu0
    %v2049 = vadd.f32 %v1276, %v2048
    %2050 = vdwg.mxu0
    %v2051 = vxor.u32 %v1301, 2147483648
    %v2052 = vxor.u32 %v1304, 2147483648
    %v2053 = vxor.u32 %v2046, 2147483648
    %v2054 = vxor.u32 %v2049, 2147483648
    %v2055 = vmul.f32 %v2051, 1.442695
    %v2056 = vpow.pop %v2055
    %v2057 = vmul.f32 %v2052, 1.442695
    %v2058 = vpow.pop %v2057
    %v2059 = vmul.f32 %v2053, 1.442695
    %v2060 = vpow.pop %v2059
    %v2061 = vmul.f32 %v2054, 1.442695
    %v2062 = vpow.pop %v2061
    %v2063 = vadd.f32 %v2056, 1.0
    %v2064 = vadd.f32 %v2058, 1.0
    %v2065 = vadd.f32 %v2060, 1.0
    %v2066 = vadd.f32 %v2062, 1.0
    %v2067 = vrcp.pop %v2063
    %v2068 = vmul.f32 %v2063, %v2067
    %v2069 = vsub.f32 1.0, %v2068
    %v2070 = vmul.f32 %v2067, %v2069
    %v2071 = vadd.f32 %v2067, %v2070
    %vm2072 = vweird.f32 %v2063
    %vm2073 = vweird.f32 %v2067
    %vm2074 = vmor %vm2072, %vm2073
    %v2075 = vsel %vm2074, %v2067, %v2071
    %v2076 = vand.u32 2147483647, %v2063
    %vm2077 = vcmp.eq.f32.partialorder %v2076, 8.507059e+37
    %v2078 = vand.u32 %v2063, 2147483648
    %v2079 = vor.u32 1.1754944e-38, %v2078
    %v2080 = vsel %vm2077, %v2079, %v2075
    %v2081 = vmul.f32 1.0, %v2080
    %v2082 = vrcp.pop %v2064
    %v2083 = vmul.f32 %v2064, %v2082
    %v2084 = vsub.f32 1.0, %v2083
    %v2085 = vmul.f32 %v2082, %v2084
    %v2086 = vadd.f32 %v2082, %v2085
    %vm2087 = vweird.f32 %v2064
    %vm2088 = vweird.f32 %v2082
    %vm2089 = vmor %vm2087, %vm2088
    %v2090 = vsel %vm2089, %v2082, %v2086
    %v2091 = vand.u32 2147483647, %v2064
    %vm2092 = vcmp.eq.f32.partialorder %v2091, 8.507059e+37
    %v2093 = vand.u32 %v2064, 2147483648
    %v2094 = vor.u32 1.1754944e-38, %v2093
    %v2095 = vsel %vm2092, %v2094, %v2090
    %v2096 = vmul.f32 1.0, %v2095
    %v2097 = vrcp.pop %v2065
    %v2098 = vmul.f32 %v2065, %v2097
    %v2099 = vsub.f32 1.0, %v2098
    %v2100 = vmul.f32 %v2097, %v2099
    %v2101 = vadd.f32 %v2097, %v2100
    %vm2102 = vweird.f32 %v2065
    %vm2103 = vweird.f32 %v2097
    %vm2104 = vmor %vm2102, %vm2103
    %v2105 = vsel %vm2104, %v2097, %v2101
    %v2106 = vand.u32 2147483647, %v2065
    %vm2107 = vcmp.eq.f32.partialorder %v2106, 8.507059e+37
    %v2108 = vand.u32 %v2065, 2147483648
    %v2109 = vor.u32 1.1754944e-38, %v2108
    %v2110 = vsel %vm2107, %v2109, %v2105
    %v2111 = vmul.f32 1.0, %v2110
    %v2112 = vrcp.pop %v2066
    %v2113 = vmul.f32 %v2066, %v2112
    %v2114 = vsub.f32 1.0, %v2113
    %v2115 = vmul.f32 %v2112, %v2114
    %v2116 = vadd.f32 %v2112, %v2115
    %vm2117 = vweird.f32 %v2066
    %vm2118 = vweird.f32 %v2112
    %vm2119 = vmor %vm2117, %vm2118
    %v2120 = vsel %vm2119, %v2112, %v2116
    %v2121 = vand.u32 2147483647, %v2066
    %vm2122 = vcmp.eq.f32.partialorder %v2121, 8.507059e+37
    %v2123 = vand.u32 %v2066, 2147483648
    %v2124 = vor.u32 1.1754944e-38, %v2123
    %v2125 = vsel %vm2122, %v2124, %v2120
    %v2126 = vmul.f32 1.0, %v2125
    %v2127 = vmul.f32 %v1301, %v2081
    %v2128 = vmul.f32 %v1304, %v2096
    %v2129 = vmul.f32 %v2046, %v2111
    %v2130 = vmul.f32 %v2049, %v2126
    %v2131 = vperm.slane %v29, 1
    %v2133 = vsel %vm1017, %v2127, 0
    %v2136 = vsel %vm1017, %v2128, 0
    %v2139 = vsel %vm1017, %v2129, 0
    %v2142 = vsel %vm1017, %v2130, 0
    %2144 = vmatpush.msra.mxu0 0.0
    %2145 = vmatpush.msra.mxu0 0.0
    %2146 = vmatpush.msra.mxu0 0.0
    %2147 = vmatpush.msra.mxu0 0.0
    %2148 = vmatpush.msra.mxu0 0.0
    %2149 = vmatpush.msra.mxu0 0.0
    %2150 = vmatpush.msra.mxu0 0.0
    %2151 = vmatpush.msra.mxu0 0.0
    %2152 = vmatpush.msra.mxu0 0.0
    %2153 = vmatpush.msra.mxu0 0.0
    %2154 = vmatpush.msra.mxu0 0.0
    %2155 = vmatpush.msra.mxu0 0.0
    %2156 = vmatpush.msra.mxu0 %v27
    %2157 = vmatpush.msra.mxu0 %v26
    %2158 = vmatpush.msra.mxu0 %v25
    %2159 = vmatpush.msra.mxu0 %v24
    %2160 = vmatmul.f32.gmra.mxu0 %v2133
    %v2161 = vpop.f32.mrf.mxu0
    %v2162 = vadd.f32 %v2131, %v2161
    %2163 = vmatmul.f32.gmra.mxu0 %v2136
    %v2164 = vpop.f32.mrf.mxu0
    %v2165 = vadd.f32 %v2131, %v2164
    %2166 = vmatmul.f32.gmra.mxu0 %v2139
    %v2167 = vpop.f32.mrf.mxu0
    %v2168 = vadd.f32 %v2131, %v2167
    %2169 = vmatmul.f32.gmra.mxu0 %v2142
    %v2170 = vpop.f32.mrf.mxu0
    %v2171 = vadd.f32 %v2131, %v2170
    %2172 = vdwg.mxu0
    %v2175 = vrot.slane %v2162, 1
    %v2176 = vrot.slane %v2162, 2
    %v2177 = vrot.slane %v2162, 3
    %v2178 = vrot.slane %v2162, 4
    %v2179 = vrot.slane %v2162, 5
    %v2180 = vrot.slane %v2162, 6
    %v2181 = vrot.slane %v2162, 7
    %v2182 = vrot.slane %v2165, 1
    %v2183 = vrot.slane %v2165, 2
    %v2184 = vrot.slane %v2165, 3
    %v2185 = vrot.slane %v2165, 4
    %v2186 = vrot.slane %v2165, 5
    %v2187 = vrot.slane %v2165, 6
    %v2188 = vrot.slane %v2165, 7
    %v2189 = vperm.slane %v2162, 0
    %v2190 = vperm.slane %v2175, 0
    %v2191 = vperm.slane %v2176, 0
    %v2192 = vperm.slane %v2177, 0
    %v2193 = vperm.slane %v2178, 0
    %v2194 = vperm.slane %v2179, 0
    %v2195 = vperm.slane %v2180, 0
    %v2196 = vperm.slane %v2181, 0
    %v2197 = vperm.slane %v2165, 0
    %v2198 = vperm.slane %v2182, 0
    %v2199 = vperm.slane %v2183, 0
    %v2200 = vperm.slane %v2184, 0
    %v2201 = vperm.slane %v2185, 0
    %v2202 = vperm.slane %v2186, 0
    %v2203 = vperm.slane %v2187, 0
    %v2204 = vperm.slane %v2188, 0
    %2221 = vrot.lane.b32.xlu0 %v2162, 32
    %v2222 = vpop.permute.xlu0 %2221
    %2223 = vrot.lane.b32.xlu0 %v2165, 32
    %v2224 = vpop.permute.xlu0 %2223
    %v2227 = vadd.f32 %v2189, %v2222
    %v2228 = vadd.f32 %v2189, %v2224
    %v2229 = vadd.f32 %v2190, %v2222
    %v2230 = vadd.f32 %v2190, %v2224
    %v2231 = vadd.f32 %v2191, %v2222
    %v2232 = vadd.f32 %v2191, %v2224
    %v2233 = vadd.f32 %v2192, %v2222
    %v2234 = vadd.f32 %v2192, %v2224
    %v2235 = vadd.f32 %v2193, %v2222
    %v2236 = vadd.f32 %v2193, %v2224
    %v2237 = vadd.f32 %v2194, %v2222
    %v2238 = vadd.f32 %v2194, %v2224
    %v2239 = vadd.f32 %v2195, %v2222
    %v2240 = vadd.f32 %v2195, %v2224
    %v2241 = vadd.f32 %v2196, %v2222
    %v2242 = vadd.f32 %v2196, %v2224
    %v2243 = vadd.f32 %v2197, %v2222
    %v2244 = vadd.f32 %v2197, %v2224
    %v2245 = vadd.f32 %v2198, %v2222
    %v2246 = vadd.f32 %v2198, %v2224
    %v2247 = vadd.f32 %v2199, %v2222
    %v2248 = vadd.f32 %v2199, %v2224
    %v2249 = vadd.f32 %v2200, %v2222
    %v2250 = vadd.f32 %v2200, %v2224
    %v2251 = vadd.f32 %v2201, %v2222
    %v2252 = vadd.f32 %v2201, %v2224
    %v2253 = vadd.f32 %v2202, %v2222
    %v2254 = vadd.f32 %v2202, %v2224
    %v2255 = vadd.f32 %v2203, %v2222
    %v2256 = vadd.f32 %v2203, %v2224
    %v2257 = vadd.f32 %v2204, %v2222
    %v2258 = vadd.f32 %v2204, %v2224
    %v2259 = vadd.f32 %v2227, %v309
    %v2260 = vadd.f32 %v2228, %v312
    %v2261 = vadd.f32 %v2229, %v315
    %v2262 = vadd.f32 %v2230, %v318
    %v2263 = vadd.f32 %v2231, %v321
    %v2264 = vadd.f32 %v2232, %v324
    %v2265 = vadd.f32 %v2233, %v327
    %v2266 = vadd.f32 %v2234, %v330
    %v2267 = vadd.f32 %v2235, %v333
    %v2268 = vadd.f32 %v2236, %v336
    %v2269 = vadd.f32 %v2237, %v339
    %v2270 = vadd.f32 %v2238, %v342
    %v2271 = vadd.f32 %v2239, %v345
    %v2272 = vadd.f32 %v2240, %v348
    %v2273 = vadd.f32 %v2241, %v351
    %v2274 = vadd.f32 %v2242, %v354
    %v2275 = vadd.f32 %v2243, %v357
    %v2276 = vadd.f32 %v2244, %v360
    %v2277 = vadd.f32 %v2245, %v363
    %v2278 = vadd.f32 %v2246, %v366
    %v2279 = vadd.f32 %v2247, %v369
    %v2280 = vadd.f32 %v2248, %v372
    %v2281 = vadd.f32 %v2249, %v375
    %v2282 = vadd.f32 %v2250, %v378
    %v2283 = vadd.f32 %v2251, %v381
    %v2284 = vadd.f32 %v2252, %v384
    %v2285 = vadd.f32 %v2253, %v387
    %v2286 = vadd.f32 %v2254, %v390
    %v2287 = vadd.f32 %v2255, %v393
    %v2288 = vadd.f32 %v2256, %v396
    %v2289 = vadd.f32 %v2257, %v399
    %v2290 = vadd.f32 %v2258, %v402
    %v2291 = vmul.f32 %v2259, 0.2
    %v2292 = vmul.f32 %v2260, 0.2
    %v2293 = vmul.f32 %v2261, 0.2
    %v2294 = vmul.f32 %v2262, 0.2
    %v2295 = vmul.f32 %v2263, 0.2
    %v2296 = vmul.f32 %v2264, 0.2
    %v2297 = vmul.f32 %v2265, 0.2
    %v2298 = vmul.f32 %v2266, 0.2
    %v2299 = vmul.f32 %v2267, 0.2
    %v2300 = vmul.f32 %v2268, 0.2
    %v2301 = vmul.f32 %v2269, 0.2
    %v2302 = vmul.f32 %v2270, 0.2
    %v2303 = vmul.f32 %v2271, 0.2
    %v2304 = vmul.f32 %v2272, 0.2
    %v2305 = vmul.f32 %v2273, 0.2
    %v2306 = vmul.f32 %v2274, 0.2
    %v2307 = vmul.f32 %v2275, 0.2
    %v2308 = vmul.f32 %v2276, 0.2
    %v2309 = vmul.f32 %v2277, 0.2
    %v2310 = vmul.f32 %v2278, 0.2
    %v2311 = vmul.f32 %v2279, 0.2
    %v2312 = vmul.f32 %v2280, 0.2
    %v2313 = vmul.f32 %v2281, 0.2
    %v2314 = vmul.f32 %v2282, 0.2
    %v2315 = vmul.f32 %v2283, 0.2
    %v2316 = vmul.f32 %v2284, 0.2
    %v2317 = vmul.f32 %v2285, 0.2
    %v2318 = vmul.f32 %v2286, 0.2
    %v2319 = vmul.f32 %v2287, 0.2
    %v2320 = vmul.f32 %v2288, 0.2
    %v2321 = vmul.f32 %v2289, 0.2
    %v2322 = vmul.f32 %v2290, 0.2
    %v2323 = vmax.f32 %v2259, %v2291
    %v2324 = vmax.f32 %v2260, %v2292
    %v2325 = vmax.f32 %v2261, %v2293
    %v2326 = vmax.f32 %v2262, %v2294
    %v2327 = vmax.f32 %v2263, %v2295
    %v2328 = vmax.f32 %v2264, %v2296
    %v2329 = vmax.f32 %v2265, %v2297
    %v2330 = vmax.f32 %v2266, %v2298
    %v2331 = vmax.f32 %v2267, %v2299
    %v2332 = vmax.f32 %v2268, %v2300
    %v2333 = vmax.f32 %v2269, %v2301
    %v2334 = vmax.f32 %v2270, %v2302
    %v2335 = vmax.f32 %v2271, %v2303
    %v2336 = vmax.f32 %v2272, %v2304
    %v2337 = vmax.f32 %v2273, %v2305
    %v2338 = vmax.f32 %v2274, %v2306
    %v2339 = vmax.f32 %v2275, %v2307
    %v2340 = vmax.f32 %v2276, %v2308
    %v2341 = vmax.f32 %v2277, %v2309
    %v2342 = vmax.f32 %v2278, %v2310
    %v2343 = vmax.f32 %v2279, %v2311
    %v2344 = vmax.f32 %v2280, %v2312
    %v2345 = vmax.f32 %v2281, %v2313
    %v2346 = vmax.f32 %v2282, %v2314
    %v2347 = vmax.f32 %v2283, %v2315
    %v2348 = vmax.f32 %v2284, %v2316
    %v2349 = vmax.f32 %v2285, %v2317
    %v2350 = vmax.f32 %v2286, %v2318
    %v2351 = vmax.f32 %v2287, %v2319
    %v2352 = vmax.f32 %v2288, %v2320
    %v2353 = vmax.f32 %v2289, %v2321
    %v2354 = vmax.f32 %v2290, %v2322
    %v2355 = vmul.f32 %v2323, %v852
    %v2356 = vmul.f32 %v2324, %v852
    %v2357 = vmul.f32 %v2325, %v852
    %v2358 = vmul.f32 %v2326, %v852
    %v2359 = vmul.f32 %v2327, %v852
    %v2360 = vmul.f32 %v2328, %v852
    %v2361 = vmul.f32 %v2329, %v852
    %v2362 = vmul.f32 %v2330, %v852
    %v2363 = vmul.f32 %v2331, %v852
    %v2364 = vmul.f32 %v2332, %v852
    %v2365 = vmul.f32 %v2333, %v852
    %v2366 = vmul.f32 %v2334, %v852
    %v2367 = vmul.f32 %v2335, %v852
    %v2368 = vmul.f32 %v2336, %v852
    %v2369 = vmul.f32 %v2337, %v852
    %v2370 = vmul.f32 %v2338, %v852
    %v2371 = vmul.f32 %v2339, %v852
    %v2372 = vmul.f32 %v2340, %v852
    %v2373 = vmul.f32 %v2341, %v852
    %v2374 = vmul.f32 %v2342, %v852
    %v2375 = vmul.f32 %v2343, %v852
    %v2376 = vmul.f32 %v2344, %v852
    %v2377 = vmul.f32 %v2345, %v852
    %v2378 = vmul.f32 %v2346, %v852
    %v2379 = vmul.f32 %v2347, %v852
    %v2380 = vmul.f32 %v2348, %v852
    %v2381 = vmul.f32 %v2349, %v852
    %v2382 = vmul.f32 %v2350, %v852
    %v2383 = vmul.f32 %v2351, %v852
    %v2384 = vmul.f32 %v2352, %v852
    %v2385 = vmul.f32 %v2353, %v852
    %v2386 = vmul.f32 %v2354, %v852
    %2419 = vrot.lane.b32.xlu0 %v2355, 96
    %v2420 = vpop.permute.xlu0 %2419
    %2421 = vrot.lane.b32.xlu0 %v2356, 96
    %v2422 = vpop.permute.xlu0 %2421
    %2423 = vrot.lane.b32.xlu0 %v2357, 96
    %v2424 = vpop.permute.xlu0 %2423
    %2425 = vrot.lane.b32.xlu0 %v2358, 96
    %v2426 = vpop.permute.xlu0 %2425
    %2427 = vrot.lane.b32.xlu0 %v2359, 96
    %v2428 = vpop.permute.xlu0 %2427
    %2429 = vrot.lane.b32.xlu0 %v2360, 96
    %v2430 = vpop.permute.xlu0 %2429
    %2431 = vrot.lane.b32.xlu0 %v2361, 96
    %v2432 = vpop.permute.xlu0 %2431
    %2433 = vrot.lane.b32.xlu0 %v2362, 96
    %v2434 = vpop.permute.xlu0 %2433
    %2435 = vrot.lane.b32.xlu0 %v2363, 96
    %v2436 = vpop.permute.xlu0 %2435
    %2437 = vrot.lane.b32.xlu0 %v2364, 96
    %v2438 = vpop.permute.xlu0 %2437
    %2439 = vrot.lane.b32.xlu0 %v2365, 96
    %v2440 = vpop.permute.xlu0 %2439
    %2441 = vrot.lane.b32.xlu0 %v2366, 96
    %v2442 = vpop.permute.xlu0 %2441
    %2443 = vrot.lane.b32.xlu0 %v2367, 96
    %v2444 = vpop.permute.xlu0 %2443
    %2445 = vrot.lane.b32.xlu0 %v2368, 96
    %v2446 = vpop.permute.xlu0 %2445
    %2447 = vrot.lane.b32.xlu0 %v2369, 96
    %v2448 = vpop.permute.xlu0 %2447
    %2449 = vrot.lane.b32.xlu0 %v2370, 96
    %v2450 = vpop.permute.xlu0 %2449
    %2451 = vrot.lane.b32.xlu0 %v2371, 96
    %v2452 = vpop.permute.xlu0 %2451
    %2453 = vrot.lane.b32.xlu0 %v2372, 96
    %v2454 = vpop.permute.xlu0 %2453
    %2455 = vrot.lane.b32.xlu0 %v2373, 96
    %v2456 = vpop.permute.xlu0 %2455
    %2457 = vrot.lane.b32.xlu0 %v2374, 96
    %v2458 = vpop.permute.xlu0 %2457
    %2459 = vrot.lane.b32.xlu0 %v2375, 96
    %v2460 = vpop.permute.xlu0 %2459
    %2461 = vrot.lane.b32.xlu0 %v2376, 96
    %v2462 = vpop.permute.xlu0 %2461
    %2463 = vrot.lane.b32.xlu0 %v2377, 96
    %v2464 = vpop.permute.xlu0 %2463
    %2465 = vrot.lane.b32.xlu0 %v2378, 96
    %v2466 = vpop.permute.xlu0 %2465
    %2467 = vrot.lane.b32.xlu0 %v2379, 96
    %v2468 = vpop.permute.xlu0 %2467
    %2469 = vrot.lane.b32.xlu0 %v2380, 96
    %v2470 = vpop.permute.xlu0 %2469
    %2471 = vrot.lane.b32.xlu0 %v2381, 96
    %v2472 = vpop.permute.xlu0 %2471
    %2473 = vrot.lane.b32.xlu0 %v2382, 96
    %v2474 = vpop.permute.xlu0 %2473
    %2475 = vrot.lane.b32.xlu0 %v2383, 96
    %v2476 = vpop.permute.xlu0 %2475
    %2477 = vrot.lane.b32.xlu0 %v2384, 96
    %v2478 = vpop.permute.xlu0 %2477
    %2479 = vrot.lane.b32.xlu0 %v2385, 96
    %v2480 = vpop.permute.xlu0 %2479
    %2481 = vrot.lane.b32.xlu0 %v2386, 96
    %v2482 = vpop.permute.xlu0 %2481
    %v2515 = vsel %vm1017, %v2420, 0.0
    %2516 = vadd.xlane.f32.xlu0 %v2515
    %v2517 = vpop.xlane.xlu0 %2516
    %v2518 = vsel %vm1017, %v2422, 0.0
    %2519 = vadd.xlane.f32.xlu0 %v2518
    %v2520 = vpop.xlane.xlu0 %2519
    %v2521 = vsel %vm1017, %v2424, 0.0
    %2522 = vadd.xlane.f32.xlu0 %v2521
    %v2523 = vpop.xlane.xlu0 %2522
    %v2524 = vsel %vm1017, %v2426, 0.0
    %2525 = vadd.xlane.f32.xlu0 %v2524
    %v2526 = vpop.xlane.xlu0 %2525
    %v2527 = vsel %vm1017, %v2428, 0.0
    %2528 = vadd.xlane.f32.xlu0 %v2527
    %v2529 = vpop.xlane.xlu0 %2528
    %v2530 = vsel %vm1017, %v2430, 0.0
    %2531 = vadd.xlane.f32.xlu0 %v2530
    %v2532 = vpop.xlane.xlu0 %2531
    %v2533 = vsel %vm1017, %v2432, 0.0
    %2534 = vadd.xlane.f32.xlu0 %v2533
    %v2535 = vpop.xlane.xlu0 %2534
    %v2536 = vsel %vm1017, %v2434, 0.0
    %2537 = vadd.xlane.f32.xlu0 %v2536
    %v2538 = vpop.xlane.xlu0 %2537
    %v2539 = vsel %vm1017, %v2436, 0.0
    %2540 = vadd.xlane.f32.xlu0 %v2539
    %v2541 = vpop.xlane.xlu0 %2540
    %v2542 = vsel %vm1017, %v2438, 0.0
    %2543 = vadd.xlane.f32.xlu0 %v2542
    %v2544 = vpop.xlane.xlu0 %2543
    %v2545 = vsel %vm1017, %v2440, 0.0
    %2546 = vadd.xlane.f32.xlu0 %v2545
    %v2547 = vpop.xlane.xlu0 %2546
    %v2548 = vsel %vm1017, %v2442, 0.0
    %2549 = vadd.xlane.f32.xlu0 %v2548
    %v2550 = vpop.xlane.xlu0 %2549
    %v2551 = vsel %vm1017, %v2444, 0.0
    %2552 = vadd.xlane.f32.xlu0 %v2551
    %v2553 = vpop.xlane.xlu0 %2552
    %v2554 = vsel %vm1017, %v2446, 0.0
    %2555 = vadd.xlane.f32.xlu0 %v2554
    %v2556 = vpop.xlane.xlu0 %2555
    %v2557 = vsel %vm1017, %v2448, 0.0
    %2558 = vadd.xlane.f32.xlu0 %v2557
    %v2559 = vpop.xlane.xlu0 %2558
    %v2560 = vsel %vm1017, %v2450, 0.0
    %2561 = vadd.xlane.f32.xlu0 %v2560
    %v2562 = vpop.xlane.xlu0 %2561
    %v2563 = vsel %vm1017, %v2452, 0.0
    %2564 = vadd.xlane.f32.xlu0 %v2563
    %v2565 = vpop.xlane.xlu0 %2564
    %v2566 = vsel %vm1017, %v2454, 0.0
    %2567 = vadd.xlane.f32.xlu0 %v2566
    %v2568 = vpop.xlane.xlu0 %2567
    %v2569 = vsel %vm1017, %v2456, 0.0
    %2570 = vadd.xlane.f32.xlu0 %v2569
    %v2571 = vpop.xlane.xlu0 %2570
    %v2572 = vsel %vm1017, %v2458, 0.0
    %2573 = vadd.xlane.f32.xlu0 %v2572
    %v2574 = vpop.xlane.xlu0 %2573
    %v2575 = vsel %vm1017, %v2460, 0.0
    %2576 = vadd.xlane.f32.xlu0 %v2575
    %v2577 = vpop.xlane.xlu0 %2576
    %v2578 = vsel %vm1017, %v2462, 0.0
    %2579 = vadd.xlane.f32.xlu0 %v2578
    %v2580 = vpop.xlane.xlu0 %2579
    %v2581 = vsel %vm1017, %v2464, 0.0
    %2582 = vadd.xlane.f32.xlu0 %v2581
    %v2583 = vpop.xlane.xlu0 %2582
    %v2584 = vsel %vm1017, %v2466, 0.0
    %2585 = vadd.xlane.f32.xlu0 %v2584
    %v2586 = vpop.xlane.xlu0 %2585
    %v2587 = vsel %vm1017, %v2468, 0.0
    %2588 = vadd.xlane.f32.xlu0 %v2587
    %v2589 = vpop.xlane.xlu0 %2588
    %v2590 = vsel %vm1017, %v2470, 0.0
    %2591 = vadd.xlane.f32.xlu0 %v2590
    %v2592 = vpop.xlane.xlu0 %2591
    %v2593 = vsel %vm1017, %v2472, 0.0
    %2594 = vadd.xlane.f32.xlu0 %v2593
    %v2595 = vpop.xlane.xlu0 %2594
    %v2596 = vsel %vm1017, %v2474, 0.0
    %2597 = vadd.xlane.f32.xlu0 %v2596
    %v2598 = vpop.xlane.xlu0 %2597
    %v2599 = vsel %vm1017, %v2476, 0.0
    %2600 = vadd.xlane.f32.xlu0 %v2599
    %v2601 = vpop.xlane.xlu0 %2600
    %v2602 = vsel %vm1017, %v2478, 0.0
    %2603 = vadd.xlane.f32.xlu0 %v2602
    %v2604 = vpop.xlane.xlu0 %2603
    %v2605 = vsel %vm1017, %v2480, 0.0
    %2606 = vadd.xlane.f32.xlu0 %v2605
    %v2607 = vpop.xlane.xlu0 %2606
    %v2608 = vsel %vm1017, %v2482, 0.0
    %2609 = vadd.xlane.f32.xlu0 %v2608
    %v2610 = vpop.xlane.xlu0 %2609
    %v2643 = vperm.slane %v2517, %v1147
    %v2644 = vperm.slane %v2520, %v1149
    %v2645 = vsel %vm1151, %v2644, %v2643
    %v2646 = vperm.slane %v2523, %v1147
    %v2647 = vperm.slane %v2526, %v1149
    %v2648 = vsel %vm1151, %v2647, %v2646
    %v2649 = vperm.slane %v2529, %v1147
    %v2650 = vperm.slane %v2532, %v1149
    %v2651 = vsel %vm1151, %v2650, %v2649
    %v2652 = vperm.slane %v2535, %v1147
    %v2653 = vperm.slane %v2538, %v1149
    %v2654 = vsel %vm1151, %v2653, %v2652
    %v2655 = vperm.slane %v2541, %v1147
    %v2656 = vperm.slane %v2544, %v1149
    %v2657 = vsel %vm1151, %v2656, %v2655
    %v2658 = vperm.slane %v2547, %v1147
    %v2659 = vperm.slane %v2550, %v1149
    %v2660 = vsel %vm1151, %v2659, %v2658
    %v2661 = vperm.slane %v2553, %v1147
    %v2662 = vperm.slane %v2556, %v1149
    %v2663 = vsel %vm1151, %v2662, %v2661
    %v2664 = vperm.slane %v2559, %v1147
    %v2665 = vperm.slane %v2562, %v1149
    %v2666 = vsel %vm1151, %v2665, %v2664
    %v2667 = vperm.slane %v2565, %v1147
    %v2668 = vperm.slane %v2568, %v1149
    %v2669 = vsel %vm1151, %v2668, %v2667
    %v2670 = vperm.slane %v2571, %v1147
    %v2671 = vperm.slane %v2574, %v1149
    %v2672 = vsel %vm1151, %v2671, %v2670
    %v2673 = vperm.slane %v2577, %v1147
    %v2674 = vperm.slane %v2580, %v1149
    %v2675 = vsel %vm1151, %v2674, %v2673
    %v2676 = vperm.slane %v2583, %v1147
    %v2677 = vperm.slane %v2586, %v1149
    %v2678 = vsel %vm1151, %v2677, %v2676
    %v2679 = vperm.slane %v2589, %v1147
    %v2680 = vperm.slane %v2592, %v1149
    %v2681 = vsel %vm1151, %v2680, %v2679
    %v2682 = vperm.slane %v2595, %v1147
    %v2683 = vperm.slane %v2598, %v1149
    %v2684 = vsel %vm1151, %v2683, %v2682
    %v2685 = vperm.slane %v2601, %v1147
    %v2686 = vperm.slane %v2604, %v1149
    %v2687 = vsel %vm1151, %v2686, %v2685
    %v2688 = vperm.slane %v2607, %v1147
    %v2689 = vperm.slane %v2610, %v1149
    %v2690 = vsel %vm1151, %v2689, %v2688
    %v2691 = vsel %vm1198, %v2648, %v2645
    %v2692 = vsel %vm1200, %v2651, %v2691
    %v2693 = vsel %vm1202, %v2654, %v2692
    %v2694 = vsel %vm1204, %v2657, %v2693
    %v2695 = vsel %vm1206, %v2660, %v2694
    %v2696 = vsel %vm1208, %v2663, %v2695
    %v2697 = vsel %vm1210, %v2666, %v2696
    %v2698 = vsel %vm1198, %v2672, %v2669
    %v2699 = vsel %vm1200, %v2675, %v2698
    %v2700 = vsel %vm1202, %v2678, %v2699
    %v2701 = vsel %vm1204, %v2681, %v2700
    %v2702 = vsel %vm1206, %v2684, %v2701
    %v2703 = vsel %vm1208, %v2687, %v2702
    %v2704 = vsel %vm1210, %v2690, %v2703
    %v2707 = vsel %vm30, %v2697, -1e+30
    %v2708 = vsel %vm31, %v2704, -1e+30
    %v2709 = vsel %vm1223, %v2707, -inf
    %2710 = vmax.xlane.f32.xlu0 %v2709
    %v2711 = vpop.xlane.xlu0 %2710
    %v2712 = vsel %vm1223, %v2708, -inf
    %2713 = vmax.xlane.f32.xlu0 %v2712
    %v2714 = vpop.xlane.xlu0 %2713
    %v2715 = vsub.f32 %v2707, %v2711
    %v2716 = vsub.f32 %v2708, %v2714
    %v2717 = vmul.f32 %v2715, 1.442695
    %v2718 = vpow.pop %v2717
    %v2719 = vmul.f32 %v2716, 1.442695
    %v2720 = vpow.pop %v2719
    %v2721 = vsel %vm30, %v2718, 0.0
    %v2722 = vsel %vm31, %v2720, 0.0
    %v2723 = vsel %vm1223, %v2721, 0.0
    %2724 = vadd.xlane.f32.xlu0 %v2723
    %v2725 = vpop.xlane.xlu0 %2724
    %v2726 = vsel %vm1223, %v2722, 0.0
    %2727 = vadd.xlane.f32.xlu0 %v2726
    %v2728 = vpop.xlane.xlu0 %2727
    %v2729 = vadd.f32 %v2725, 1e-16
    %v2730 = vadd.f32 %v2728, 1e-16
    %v2731 = vrcp.pop %v2729
    %v2732 = vmul.f32 %v2729, %v2731
    %v2733 = vsub.f32 1.0, %v2732
    %v2734 = vmul.f32 %v2731, %v2733
    %v2735 = vadd.f32 %v2731, %v2734
    %vm2736 = vweird.f32 %v2729
    %vm2737 = vweird.f32 %v2731
    %vm2738 = vmor %vm2736, %vm2737
    %v2739 = vsel %vm2738, %v2731, %v2735
    %v2740 = vand.u32 2147483647, %v2729
    %vm2741 = vcmp.eq.f32.partialorder %v2740, 8.507059e+37
    %v2742 = vand.u32 %v2729, 2147483648
    %v2743 = vor.u32 1.1754944e-38, %v2742
    %v2744 = vsel %vm2741, %v2743, %v2739
    %v2745 = vrcp.pop %v2730
    %v2746 = vmul.f32 %v2730, %v2745
    %v2747 = vsub.f32 1.0, %v2746
    %v2748 = vmul.f32 %v2745, %v2747
    %v2749 = vadd.f32 %v2745, %v2748
    %vm2750 = vweird.f32 %v2730
    %vm2751 = vweird.f32 %v2745
    %vm2752 = vmor %vm2750, %vm2751
    %v2753 = vsel %vm2752, %v2745, %v2749
    %v2754 = vand.u32 2147483647, %v2730
    %vm2755 = vcmp.eq.f32.partialorder %v2754, 8.507059e+37
    %v2756 = vand.u32 %v2730, 2147483648
    %v2757 = vor.u32 1.1754944e-38, %v2756
    %v2758 = vsel %vm2755, %v2757, %v2753
    %v2759 = vmul.f32 %v2721, %v2744
    %v2760 = vmul.f32 %v2722, %v2758
    %2762 = vrot.lane.b32.xlu0 %v1276, 96
    %v2763 = vpop.permute.xlu0 %2762
    %v2766 = vsel %vm1223, %v2759, 0
    %v2769 = vsel %vm1223, %v2760, 0
    %2771 = vmatpush.msra.mxu0 0.0
    %2772 = vmatpush.msra.mxu0 0.0
    %2773 = vmatpush.msra.mxu0 0.0
    %2774 = vmatpush.msra.mxu0 0.0
    %2775 = vmatpush.msra.mxu0 0.0
    %2776 = vmatpush.msra.mxu0 0.0
    %2777 = vmatpush.msra.mxu0 0.0
    %2778 = vmatpush.msra.mxu0 0.0
    %2779 = vmatpush.msra.mxu0 0.0
    %2780 = vmatpush.msra.mxu0 0.0
    %2781 = vmatpush.msra.mxu0 0.0
    %2782 = vmatpush.msra.mxu0 0.0
    %2783 = vmatpush.msra.mxu0 0.0
    %2784 = vmatpush.msra.mxu0 0.0
    %2785 = vmatpush.msra.mxu0 %v2165
    %2786 = vmatpush.msra.mxu0 %v2162
    %2787 = vmatmul.f32.gmra.mxu0 %v2766
    %v2788 = vpop.f32.mrf.mxu0
    %v2789 = vadd.f32 %v2763, %v2788
    %2790 = vmatmul.f32.gmra.mxu0 %v2769
    %v2791 = vpop.f32.mrf.mxu0
    %v2792 = vadd.f32 %v2763, %v2791
    %2793 = vdwg.mxu0
    %v2796 = vrot.slane %v2168, 1
    %v2797 = vrot.slane %v2168, 2
    %v2798 = vrot.slane %v2168, 3
    %v2799 = vrot.slane %v2168, 4
    %v2800 = vrot.slane %v2168, 5
    %v2801 = vrot.slane %v2168, 6
    %v2802 = vrot.slane %v2168, 7
    %v2803 = vrot.slane %v2171, 1
    %v2804 = vrot.slane %v2171, 2
    %v2805 = vrot.slane %v2171, 3
    %v2806 = vrot.slane %v2171, 4
    %v2807 = vrot.slane %v2171, 5
    %v2808 = vrot.slane %v2171, 6
    %v2809 = vrot.slane %v2171, 7
    %v2810 = vperm.slane %v2168, 0
    %v2811 = vperm.slane %v2796, 0
    %v2812 = vperm.slane %v2797, 0
    %v2813 = vperm.slane %v2798, 0
    %v2814 = vperm.slane %v2799, 0
    %v2815 = vperm.slane %v2800, 0
    %v2816 = vperm.slane %v2801, 0
    %v2817 = vperm.slane %v2802, 0
    %v2818 = vperm.slane %v2171, 0
    %v2819 = vperm.slane %v2803, 0
    %v2820 = vperm.slane %v2804, 0
    %v2821 = vperm.slane %v2805, 0
    %v2822 = vperm.slane %v2806, 0
    %v2823 = vperm.slane %v2807, 0
    %v2824 = vperm.slane %v2808, 0
    %v2825 = vperm.slane %v2809, 0
    %2842 = vrot.lane.b32.xlu0 %v2168, 32
    %v2843 = vpop.permute.xlu0 %2842
    %2844 = vrot.lane.b32.xlu0 %v2171, 32
    %v2845 = vpop.permute.xlu0 %2844
    %v2848 = vadd.f32 %v2810, %v2843
    %v2849 = vadd.f32 %v2810, %v2845
    %v2850 = vadd.f32 %v2811, %v2843
    %v2851 = vadd.f32 %v2811, %v2845
    %v2852 = vadd.f32 %v2812, %v2843
    %v2853 = vadd.f32 %v2812, %v2845
    %v2854 = vadd.f32 %v2813, %v2843
    %v2855 = vadd.f32 %v2813, %v2845
    %v2856 = vadd.f32 %v2814, %v2843
    %v2857 = vadd.f32 %v2814, %v2845
    %v2858 = vadd.f32 %v2815, %v2843
    %v2859 = vadd.f32 %v2815, %v2845
    %v2860 = vadd.f32 %v2816, %v2843
    %v2861 = vadd.f32 %v2816, %v2845
    %v2862 = vadd.f32 %v2817, %v2843
    %v2863 = vadd.f32 %v2817, %v2845
    %v2864 = vadd.f32 %v2818, %v2843
    %v2865 = vadd.f32 %v2818, %v2845
    %v2866 = vadd.f32 %v2819, %v2843
    %v2867 = vadd.f32 %v2819, %v2845
    %v2868 = vadd.f32 %v2820, %v2843
    %v2869 = vadd.f32 %v2820, %v2845
    %v2870 = vadd.f32 %v2821, %v2843
    %v2871 = vadd.f32 %v2821, %v2845
    %v2872 = vadd.f32 %v2822, %v2843
    %v2873 = vadd.f32 %v2822, %v2845
    %v2874 = vadd.f32 %v2823, %v2843
    %v2875 = vadd.f32 %v2823, %v2845
    %v2876 = vadd.f32 %v2824, %v2843
    %v2877 = vadd.f32 %v2824, %v2845
    %v2878 = vadd.f32 %v2825, %v2843
    %v2879 = vadd.f32 %v2825, %v2845
    %v2880 = vadd.f32 %v2848, %v405
    %v2881 = vadd.f32 %v2849, %v408
    %v2882 = vadd.f32 %v2850, %v411
    %v2883 = vadd.f32 %v2851, %v414
    %v2884 = vadd.f32 %v2852, %v417
    %v2885 = vadd.f32 %v2853, %v420
    %v2886 = vadd.f32 %v2854, %v423
    %v2887 = vadd.f32 %v2855, %v426
    %v2888 = vadd.f32 %v2856, %v429
    %v2889 = vadd.f32 %v2857, %v432
    %v2890 = vadd.f32 %v2858, %v435
    %v2891 = vadd.f32 %v2859, %v438
    %v2892 = vadd.f32 %v2860, %v441
    %v2893 = vadd.f32 %v2861, %v444
    %v2894 = vadd.f32 %v2862, %v447
    %v2895 = vadd.f32 %v2863, %v450
    %v2896 = vadd.f32 %v2864, %v453
    %v2897 = vadd.f32 %v2865, %v456
    %v2898 = vadd.f32 %v2866, %v459
    %v2899 = vadd.f32 %v2867, %v462
    %v2900 = vadd.f32 %v2868, %v465
    %v2901 = vadd.f32 %v2869, %v468
    %v2902 = vadd.f32 %v2870, %v471
    %v2903 = vadd.f32 %v2871, %v474
    %v2904 = vadd.f32 %v2872, %v477
    %v2905 = vadd.f32 %v2873, %v480
    %v2906 = vadd.f32 %v2874, %v483
    %v2907 = vadd.f32 %v2875, %v486
    %v2908 = vadd.f32 %v2876, %v489
    %v2909 = vadd.f32 %v2877, %v492
    %v2910 = vadd.f32 %v2878, %v495
    %v2911 = vadd.f32 %v2879, %v498
    %v2912 = vmul.f32 %v2880, 0.2
    %v2913 = vmul.f32 %v2881, 0.2
    %v2914 = vmul.f32 %v2882, 0.2
    %v2915 = vmul.f32 %v2883, 0.2
    %v2916 = vmul.f32 %v2884, 0.2
    %v2917 = vmul.f32 %v2885, 0.2
    %v2918 = vmul.f32 %v2886, 0.2
    %v2919 = vmul.f32 %v2887, 0.2
    %v2920 = vmul.f32 %v2888, 0.2
    %v2921 = vmul.f32 %v2889, 0.2
    %v2922 = vmul.f32 %v2890, 0.2
    %v2923 = vmul.f32 %v2891, 0.2
    %v2924 = vmul.f32 %v2892, 0.2
    %v2925 = vmul.f32 %v2893, 0.2
    %v2926 = vmul.f32 %v2894, 0.2
    %v2927 = vmul.f32 %v2895, 0.2
    %v2928 = vmul.f32 %v2896, 0.2
    %v2929 = vmul.f32 %v2897, 0.2
    %v2930 = vmul.f32 %v2898, 0.2
    %v2931 = vmul.f32 %v2899, 0.2
    %v2932 = vmul.f32 %v2900, 0.2
    %v2933 = vmul.f32 %v2901, 0.2
    %v2934 = vmul.f32 %v2902, 0.2
    %v2935 = vmul.f32 %v2903, 0.2
    %v2936 = vmul.f32 %v2904, 0.2
    %v2937 = vmul.f32 %v2905, 0.2
    %v2938 = vmul.f32 %v2906, 0.2
    %v2939 = vmul.f32 %v2907, 0.2
    %v2940 = vmul.f32 %v2908, 0.2
    %v2941 = vmul.f32 %v2909, 0.2
    %v2942 = vmul.f32 %v2910, 0.2
    %v2943 = vmul.f32 %v2911, 0.2
    %v2944 = vmax.f32 %v2880, %v2912
    %v2945 = vmax.f32 %v2881, %v2913
    %v2946 = vmax.f32 %v2882, %v2914
    %v2947 = vmax.f32 %v2883, %v2915
    %v2948 = vmax.f32 %v2884, %v2916
    %v2949 = vmax.f32 %v2885, %v2917
    %v2950 = vmax.f32 %v2886, %v2918
    %v2951 = vmax.f32 %v2887, %v2919
    %v2952 = vmax.f32 %v2888, %v2920
    %v2953 = vmax.f32 %v2889, %v2921
    %v2954 = vmax.f32 %v2890, %v2922
    %v2955 = vmax.f32 %v2891, %v2923
    %v2956 = vmax.f32 %v2892, %v2924
    %v2957 = vmax.f32 %v2893, %v2925
    %v2958 = vmax.f32 %v2894, %v2926
    %v2959 = vmax.f32 %v2895, %v2927
    %v2960 = vmax.f32 %v2896, %v2928
    %v2961 = vmax.f32 %v2897, %v2929
    %v2962 = vmax.f32 %v2898, %v2930
    %v2963 = vmax.f32 %v2899, %v2931
    %v2964 = vmax.f32 %v2900, %v2932
    %v2965 = vmax.f32 %v2901, %v2933
    %v2966 = vmax.f32 %v2902, %v2934
    %v2967 = vmax.f32 %v2903, %v2935
    %v2968 = vmax.f32 %v2904, %v2936
    %v2969 = vmax.f32 %v2905, %v2937
    %v2970 = vmax.f32 %v2906, %v2938
    %v2971 = vmax.f32 %v2907, %v2939
    %v2972 = vmax.f32 %v2908, %v2940
    %v2973 = vmax.f32 %v2909, %v2941
    %v2974 = vmax.f32 %v2910, %v2942
    %v2975 = vmax.f32 %v2911, %v2943
    %v2976 = vmul.f32 %v2944, %v852
    %v2977 = vmul.f32 %v2945, %v852
    %v2978 = vmul.f32 %v2946, %v852
    %v2979 = vmul.f32 %v2947, %v852
    %v2980 = vmul.f32 %v2948, %v852
    %v2981 = vmul.f32 %v2949, %v852
    %v2982 = vmul.f32 %v2950, %v852
    %v2983 = vmul.f32 %v2951, %v852
    %v2984 = vmul.f32 %v2952, %v852
    %v2985 = vmul.f32 %v2953, %v852
    %v2986 = vmul.f32 %v2954, %v852
    %v2987 = vmul.f32 %v2955, %v852
    %v2988 = vmul.f32 %v2956, %v852
    %v2989 = vmul.f32 %v2957, %v852
    %v2990 = vmul.f32 %v2958, %v852
    %v2991 = vmul.f32 %v2959, %v852
    %v2992 = vmul.f32 %v2960, %v852
    %v2993 = vmul.f32 %v2961, %v852
    %v2994 = vmul.f32 %v2962, %v852
    %v2995 = vmul.f32 %v2963, %v852
    %v2996 = vmul.f32 %v2964, %v852
    %v2997 = vmul.f32 %v2965, %v852
    %v2998 = vmul.f32 %v2966, %v852
    %v2999 = vmul.f32 %v2967, %v852
    %v3000 = vmul.f32 %v2968, %v852
    %v3001 = vmul.f32 %v2969, %v852
    %v3002 = vmul.f32 %v2970, %v852
    %v3003 = vmul.f32 %v2971, %v852
    %v3004 = vmul.f32 %v2972, %v852
    %v3005 = vmul.f32 %v2973, %v852
    %v3006 = vmul.f32 %v2974, %v852
    %v3007 = vmul.f32 %v2975, %v852
    %3040 = vrot.lane.b32.xlu0 %v2976, 96
    %v3041 = vpop.permute.xlu0 %3040
    %3042 = vrot.lane.b32.xlu0 %v2977, 96
    %v3043 = vpop.permute.xlu0 %3042
    %3044 = vrot.lane.b32.xlu0 %v2978, 96
    %v3045 = vpop.permute.xlu0 %3044
    %3046 = vrot.lane.b32.xlu0 %v2979, 96
    %v3047 = vpop.permute.xlu0 %3046
    %3048 = vrot.lane.b32.xlu0 %v2980, 96
    %v3049 = vpop.permute.xlu0 %3048
    %3050 = vrot.lane.b32.xlu0 %v2981, 96
    %v3051 = vpop.permute.xlu0 %3050
    %3052 = vrot.lane.b32.xlu0 %v2982, 96
    %v3053 = vpop.permute.xlu0 %3052
    %3054 = vrot.lane.b32.xlu0 %v2983, 96
    %v3055 = vpop.permute.xlu0 %3054
    %3056 = vrot.lane.b32.xlu0 %v2984, 96
    %v3057 = vpop.permute.xlu0 %3056
    %3058 = vrot.lane.b32.xlu0 %v2985, 96
    %v3059 = vpop.permute.xlu0 %3058
    %3060 = vrot.lane.b32.xlu0 %v2986, 96
    %v3061 = vpop.permute.xlu0 %3060
    %3062 = vrot.lane.b32.xlu0 %v2987, 96
    %v3063 = vpop.permute.xlu0 %3062
    %3064 = vrot.lane.b32.xlu0 %v2988, 96
    %v3065 = vpop.permute.xlu0 %3064
    %3066 = vrot.lane.b32.xlu0 %v2989, 96
    %v3067 = vpop.permute.xlu0 %3066
    %3068 = vrot.lane.b32.xlu0 %v2990, 96
    %v3069 = vpop.permute.xlu0 %3068
    %3070 = vrot.lane.b32.xlu0 %v2991, 96
    %v3071 = vpop.permute.xlu0 %3070
    %3072 = vrot.lane.b32.xlu0 %v2992, 96
    %v3073 = vpop.permute.xlu0 %3072
    %3074 = vrot.lane.b32.xlu0 %v2993, 96
    %v3075 = vpop.permute.xlu0 %3074
    %3076 = vrot.lane.b32.xlu0 %v2994, 96
    %v3077 = vpop.permute.xlu0 %3076
    %3078 = vrot.lane.b32.xlu0 %v2995, 96
    %v3079 = vpop.permute.xlu0 %3078
    %3080 = vrot.lane.b32.xlu0 %v2996, 96
    %v3081 = vpop.permute.xlu0 %3080
    %3082 = vrot.lane.b32.xlu0 %v2997, 96
    %v3083 = vpop.permute.xlu0 %3082
    %3084 = vrot.lane.b32.xlu0 %v2998, 96
    %v3085 = vpop.permute.xlu0 %3084
    %3086 = vrot.lane.b32.xlu0 %v2999, 96
    %v3087 = vpop.permute.xlu0 %3086
    %3088 = vrot.lane.b32.xlu0 %v3000, 96
    %v3089 = vpop.permute.xlu0 %3088
    %3090 = vrot.lane.b32.xlu0 %v3001, 96
    %v3091 = vpop.permute.xlu0 %3090
    %3092 = vrot.lane.b32.xlu0 %v3002, 96
    %v3093 = vpop.permute.xlu0 %3092
    %3094 = vrot.lane.b32.xlu0 %v3003, 96
    %v3095 = vpop.permute.xlu0 %3094
    %3096 = vrot.lane.b32.xlu0 %v3004, 96
    %v3097 = vpop.permute.xlu0 %3096
    %3098 = vrot.lane.b32.xlu0 %v3005, 96
    %v3099 = vpop.permute.xlu0 %3098
    %3100 = vrot.lane.b32.xlu0 %v3006, 96
    %v3101 = vpop.permute.xlu0 %3100
    %3102 = vrot.lane.b32.xlu0 %v3007, 96
    %v3103 = vpop.permute.xlu0 %3102
    %v3136 = vsel %vm1017, %v3041, 0.0
    %3137 = vadd.xlane.f32.xlu0 %v3136
    %v3138 = vpop.xlane.xlu0 %3137
    %v3139 = vsel %vm1017, %v3043, 0.0
    %3140 = vadd.xlane.f32.xlu0 %v3139
    %v3141 = vpop.xlane.xlu0 %3140
    %v3142 = vsel %vm1017, %v3045, 0.0
    %3143 = vadd.xlane.f32.xlu0 %v3142
    %v3144 = vpop.xlane.xlu0 %3143
    %v3145 = vsel %vm1017, %v3047, 0.0
    %3146 = vadd.xlane.f32.xlu0 %v3145
    %v3147 = vpop.xlane.xlu0 %3146
    %v3148 = vsel %vm1017, %v3049, 0.0
    %3149 = vadd.xlane.f32.xlu0 %v3148
    %v3150 = vpop.xlane.xlu0 %3149
    %v3151 = vsel %vm1017, %v3051, 0.0
    %3152 = vadd.xlane.f32.xlu0 %v3151
    %v3153 = vpop.xlane.xlu0 %3152
    %v3154 = vsel %vm1017, %v3053, 0.0
    %3155 = vadd.xlane.f32.xlu0 %v3154
    %v3156 = vpop.xlane.xlu0 %3155
    %v3157 = vsel %vm1017, %v3055, 0.0
    %3158 = vadd.xlane.f32.xlu0 %v3157
    %v3159 = vpop.xlane.xlu0 %3158
    %v3160 = vsel %vm1017, %v3057, 0.0
    %3161 = vadd.xlane.f32.xlu0 %v3160
    %v3162 = vpop.xlane.xlu0 %3161
    %v3163 = vsel %vm1017, %v3059, 0.0
    %3164 = vadd.xlane.f32.xlu0 %v3163
    %v3165 = vpop.xlane.xlu0 %3164
    %v3166 = vsel %vm1017, %v3061, 0.0
    %3167 = vadd.xlane.f32.xlu0 %v3166
    %v3168 = vpop.xlane.xlu0 %3167
    %v3169 = vsel %vm1017, %v3063, 0.0
    %3170 = vadd.xlane.f32.xlu0 %v3169
    %v3171 = vpop.xlane.xlu0 %3170
    %v3172 = vsel %vm1017, %v3065, 0.0
    %3173 = vadd.xlane.f32.xlu0 %v3172
    %v3174 = vpop.xlane.xlu0 %3173
    %v3175 = vsel %vm1017, %v3067, 0.0
    %3176 = vadd.xlane.f32.xlu0 %v3175
    %v3177 = vpop.xlane.xlu0 %3176
    %v3178 = vsel %vm1017, %v3069, 0.0
    %3179 = vadd.xlane.f32.xlu0 %v3178
    %v3180 = vpop.xlane.xlu0 %3179
    %v3181 = vsel %vm1017, %v3071, 0.0
    %3182 = vadd.xlane.f32.xlu0 %v3181
    %v3183 = vpop.xlane.xlu0 %3182
    %v3184 = vsel %vm1017, %v3073, 0.0
    %3185 = vadd.xlane.f32.xlu0 %v3184
    %v3186 = vpop.xlane.xlu0 %3185
    %v3187 = vsel %vm1017, %v3075, 0.0
    %3188 = vadd.xlane.f32.xlu0 %v3187
    %v3189 = vpop.xlane.xlu0 %3188
    %v3190 = vsel %vm1017, %v3077, 0.0
    %3191 = vadd.xlane.f32.xlu0 %v3190
    %v3192 = vpop.xlane.xlu0 %3191
    %v3193 = vsel %vm1017, %v3079, 0.0
    %3194 = vadd.xlane.f32.xlu0 %v3193
    %v3195 = vpop.xlane.xlu0 %3194
    %v3196 = vsel %vm1017, %v3081, 0.0
    %3197 = vadd.xlane.f32.xlu0 %v3196
    %v3198 = vpop.xlane.xlu0 %3197
    %v3199 = vsel %vm1017, %v3083, 0.0
    %3200 = vadd.xlane.f32.xlu0 %v3199
    %v3201 = vpop.xlane.xlu0 %3200
    %v3202 = vsel %vm1017, %v3085, 0.0
    %3203 = vadd.xlane.f32.xlu0 %v3202
    %v3204 = vpop.xlane.xlu0 %3203
    %v3205 = vsel %vm1017, %v3087, 0.0
    %3206 = vadd.xlane.f32.xlu0 %v3205
    %v3207 = vpop.xlane.xlu0 %3206
    %v3208 = vsel %vm1017, %v3089, 0.0
    %3209 = vadd.xlane.f32.xlu0 %v3208
    %v3210 = vpop.xlane.xlu0 %3209
    %v3211 = vsel %vm1017, %v3091, 0.0
    %3212 = vadd.xlane.f32.xlu0 %v3211
    %v3213 = vpop.xlane.xlu0 %3212
    %v3214 = vsel %vm1017, %v3093, 0.0
    %3215 = vadd.xlane.f32.xlu0 %v3214
    %v3216 = vpop.xlane.xlu0 %3215
    %v3217 = vsel %vm1017, %v3095, 0.0
    %3218 = vadd.xlane.f32.xlu0 %v3217
    %v3219 = vpop.xlane.xlu0 %3218
    %v3220 = vsel %vm1017, %v3097, 0.0
    %3221 = vadd.xlane.f32.xlu0 %v3220
    %v3222 = vpop.xlane.xlu0 %3221
    %v3223 = vsel %vm1017, %v3099, 0.0
    %3224 = vadd.xlane.f32.xlu0 %v3223
    %v3225 = vpop.xlane.xlu0 %3224
    %v3226 = vsel %vm1017, %v3101, 0.0
    %3227 = vadd.xlane.f32.xlu0 %v3226
    %v3228 = vpop.xlane.xlu0 %3227
    %v3229 = vsel %vm1017, %v3103, 0.0
    %3230 = vadd.xlane.f32.xlu0 %v3229
    %v3231 = vpop.xlane.xlu0 %3230
    %v3264 = vperm.slane %v3138, %v1147
    %v3265 = vperm.slane %v3141, %v1149
    %v3266 = vsel %vm1151, %v3265, %v3264
    %v3267 = vperm.slane %v3144, %v1147
    %v3268 = vperm.slane %v3147, %v1149
    %v3269 = vsel %vm1151, %v3268, %v3267
    %v3270 = vperm.slane %v3150, %v1147
    %v3271 = vperm.slane %v3153, %v1149
    %v3272 = vsel %vm1151, %v3271, %v3270
    %v3273 = vperm.slane %v3156, %v1147
    %v3274 = vperm.slane %v3159, %v1149
    %v3275 = vsel %vm1151, %v3274, %v3273
    %v3276 = vperm.slane %v3162, %v1147
    %v3277 = vperm.slane %v3165, %v1149
    %v3278 = vsel %vm1151, %v3277, %v3276
    %v3279 = vperm.slane %v3168, %v1147
    %v3280 = vperm.slane %v3171, %v1149
    %v3281 = vsel %vm1151, %v3280, %v3279
    %v3282 = vperm.slane %v3174, %v1147
    %v3283 = vperm.slane %v3177, %v1149
    %v3284 = vsel %vm1151, %v3283, %v3282
    %v3285 = vperm.slane %v3180, %v1147
    %v3286 = vperm.slane %v3183, %v1149
    %v3287 = vsel %vm1151, %v3286, %v3285
    %v3288 = vperm.slane %v3186, %v1147
    %v3289 = vperm.slane %v3189, %v1149
    %v3290 = vsel %vm1151, %v3289, %v3288
    %v3291 = vperm.slane %v3192, %v1147
    %v3292 = vperm.slane %v3195, %v1149
    %v3293 = vsel %vm1151, %v3292, %v3291
    %v3294 = vperm.slane %v3198, %v1147
    %v3295 = vperm.slane %v3201, %v1149
    %v3296 = vsel %vm1151, %v3295, %v3294
    %v3297 = vperm.slane %v3204, %v1147
    %v3298 = vperm.slane %v3207, %v1149
    %v3299 = vsel %vm1151, %v3298, %v3297
    %v3300 = vperm.slane %v3210, %v1147
    %v3301 = vperm.slane %v3213, %v1149
    %v3302 = vsel %vm1151, %v3301, %v3300
    %v3303 = vperm.slane %v3216, %v1147
    %v3304 = vperm.slane %v3219, %v1149
    %v3305 = vsel %vm1151, %v3304, %v3303
    %v3306 = vperm.slane %v3222, %v1147
    %v3307 = vperm.slane %v3225, %v1149
    %v3308 = vsel %vm1151, %v3307, %v3306
    %v3309 = vperm.slane %v3228, %v1147
    %v3310 = vperm.slane %v3231, %v1149
    %v3311 = vsel %vm1151, %v3310, %v3309
    %v3312 = vsel %vm1198, %v3269, %v3266
    %v3313 = vsel %vm1200, %v3272, %v3312
    %v3314 = vsel %vm1202, %v3275, %v3313
    %v3315 = vsel %vm1204, %v3278, %v3314
    %v3316 = vsel %vm1206, %v3281, %v3315
    %v3317 = vsel %vm1208, %v3284, %v3316
    %v3318 = vsel %vm1210, %v3287, %v3317
    %v3319 = vsel %vm1198, %v3293, %v3290
    %v3320 = vsel %vm1200, %v3296, %v3319
    %v3321 = vsel %vm1202, %v3299, %v3320
    %v3322 = vsel %vm1204, %v3302, %v3321
    %v3323 = vsel %vm1206, %v3305, %v3322
    %v3324 = vsel %vm1208, %v3308, %v3323
    %v3325 = vsel %vm1210, %v3311, %v3324
    %v3328 = vsel %vm32, %v3318, -1e+30
    %v3329 = vsel %vm33, %v3325, -1e+30
    %v3330 = vsel %vm1223, %v3328, -inf
    %3331 = vmax.xlane.f32.xlu0 %v3330
    %v3332 = vpop.xlane.xlu0 %3331
    %v3333 = vsel %vm1223, %v3329, -inf
    %3334 = vmax.xlane.f32.xlu0 %v3333
    %v3335 = vpop.xlane.xlu0 %3334
    %v3336 = vsub.f32 %v3328, %v3332
    %v3337 = vsub.f32 %v3329, %v3335
    %v3338 = vmul.f32 %v3336, 1.442695
    %v3339 = vpow.pop %v3338
    %v3340 = vmul.f32 %v3337, 1.442695
    %v3341 = vpow.pop %v3340
    %v3342 = vsel %vm32, %v3339, 0.0
    %v3343 = vsel %vm33, %v3341, 0.0
    %v3344 = vsel %vm1223, %v3342, 0.0
    %3345 = vadd.xlane.f32.xlu0 %v3344
    %v3346 = vpop.xlane.xlu0 %3345
    %v3347 = vsel %vm1223, %v3343, 0.0
    %3348 = vadd.xlane.f32.xlu0 %v3347
    %v3349 = vpop.xlane.xlu0 %3348
    %v3350 = vadd.f32 %v3346, 1e-16
    %v3351 = vadd.f32 %v3349, 1e-16
    %v3352 = vrcp.pop %v3350
    %v3353 = vmul.f32 %v3350, %v3352
    %v3354 = vsub.f32 1.0, %v3353
    %v3355 = vmul.f32 %v3352, %v3354
    %v3356 = vadd.f32 %v3352, %v3355
    %vm3357 = vweird.f32 %v3350
    %vm3358 = vweird.f32 %v3352
    %vm3359 = vmor %vm3357, %vm3358
    %v3360 = vsel %vm3359, %v3352, %v3356
    %v3361 = vand.u32 2147483647, %v3350
    %vm3362 = vcmp.eq.f32.partialorder %v3361, 8.507059e+37
    %v3363 = vand.u32 %v3350, 2147483648
    %v3364 = vor.u32 1.1754944e-38, %v3363
    %v3365 = vsel %vm3362, %v3364, %v3360
    %v3366 = vrcp.pop %v3351
    %v3367 = vmul.f32 %v3351, %v3366
    %v3368 = vsub.f32 1.0, %v3367
    %v3369 = vmul.f32 %v3366, %v3368
    %v3370 = vadd.f32 %v3366, %v3369
    %vm3371 = vweird.f32 %v3351
    %vm3372 = vweird.f32 %v3366
    %vm3373 = vmor %vm3371, %vm3372
    %v3374 = vsel %vm3373, %v3366, %v3370
    %v3375 = vand.u32 2147483647, %v3351
    %vm3376 = vcmp.eq.f32.partialorder %v3375, 8.507059e+37
    %v3377 = vand.u32 %v3351, 2147483648
    %v3378 = vor.u32 1.1754944e-38, %v3377
    %v3379 = vsel %vm3376, %v3378, %v3374
    %v3380 = vmul.f32 %v3342, %v3365
    %v3381 = vmul.f32 %v3343, %v3379
    %v3383 = vsel %vm1223, %v3380, 0
    %v3386 = vsel %vm1223, %v3381, 0
    %3388 = vmatpush.msra.mxu0 0.0
    %3389 = vmatpush.msra.mxu0 0.0
    %3390 = vmatpush.msra.mxu0 0.0
    %3391 = vmatpush.msra.mxu0 0.0
    %3392 = vmatpush.msra.mxu0 0.0
    %3393 = vmatpush.msra.mxu0 0.0
    %3394 = vmatpush.msra.mxu0 0.0
    %3395 = vmatpush.msra.mxu0 0.0
    %3396 = vmatpush.msra.mxu0 0.0
    %3397 = vmatpush.msra.mxu0 0.0
    %3398 = vmatpush.msra.mxu0 0.0
    %3399 = vmatpush.msra.mxu0 0.0
    %3400 = vmatpush.msra.mxu0 0.0
    %3401 = vmatpush.msra.mxu0 0.0
    %3402 = vmatpush.msra.mxu0 %v2171
    %3403 = vmatpush.msra.mxu0 %v2168
    %3404 = vmatmul.f32.gmra.mxu0 %v3383
    %v3405 = vpop.f32.mrf.mxu0
    %v3406 = vadd.f32 %v2763, %v3405
    %3407 = vmatmul.f32.gmra.mxu0 %v3386
    %v3408 = vpop.f32.mrf.mxu0
    %v3409 = vadd.f32 %v2763, %v3408
    %3410 = vdwg.mxu0
    %3411 = vst.msk [vmem:[#allocation2] sm:$0xff] %vm1017, %v2789
    %3412 = vst.msk [vmem:[#allocation2 + $0x8] sm:$0xff] %vm1017, %v2792
    %3413 = vst.msk [vmem:[#allocation2 + $0x10] sm:$0xff] %vm1017, %v3406
    %3414 = vst.msk [vmem:[#allocation2 + $0x18] sm:$0xff] %vm1017, %v3409
    // Predicated region
    $region14: #{tpu_custom_call.1} parent=1 // pred_check
      _
    $region15: #{tpu_custom_call.1} parent=1 // pred_check_branch
      %3416 = sbr.rel (0) target = $region17
    $region16: #{tpu_custom_call.1} parent=1 // pred_region
      %3418 = vsyncadd [#allocation3], 0
      %s3419 = sshll.u32 [#allocation2], 4
      %s3420 = int_to_ptr.vmem [resolvable:$true] %s3419
      %s3421 = sshll.u32 %s3, 4
      %s3422 = int_to_ptr.hbm [resolvable:$true] %s3421
      %3427 = dma.vmem_to_hbm [thread:$0]  %s3420, 512, %s3422, [#allocation3], 128, 128, 8
    $region17: #{tpu_custom_call.1} parent=1 // pred_fallthru
      _
    // Predicated region
    $region18: #{tpu_custom_call.1} parent=1 // pred_check
      _
    $region19: #{tpu_custom_call.1} parent=1 // pred_check_branch
      %3429 = sbr.rel (0) target = $region21
    $region20: #{tpu_custom_call.1} parent=1 // pred_region
      %3431 = dma.done [#allocation3], 512
    $region21: #{tpu_custom_call.1} parent=1 // pred_fallthru
      _
    %3432 = vsyncpa [#allocation3], 1

</llo_original>
